<compile_context>
chip_gen: v7x
topology: tpu7x:2x2x1
jax: 0.10.0
libtpu: 0.0.40
codegen_flags: <defaults>
</compile_context>

<pallas_src>
import math
from functools import partial

import jax
import jax.numpy as jnp
from jax import lax
from jax.experimental import pallas as pl
from jax.experimental.pallas import tpu as pltpu


def _sparsemax_rows(z):
    """Sparsemax along the last axis of a 2-D f32 array (sort-free, O(R*M^2)).

    Rank (k_i) and partial sum (s_i) of every candidate threshold are computed
    with XLU lane reductions (a bundle slot that is idle under the MXU-bound
    attention loop).  The caller bounds R (rows per call) to cap the (R, M, M)
    temporary.
    """
    z = z.astype(jnp.float32)
    # ge[r, i, j] = (z[r, j] >= z[r, i])
    ge = (z[:, None, :] >= z[:, :, None]).astype(jnp.float32)          # (R, M, M)
    k_i = jnp.sum(ge, axis=-1)                                         # rank of z_i
    s_i = jnp.sum(ge * z[:, None, :], axis=-1)                         # sum of elems >= z_i
    in_sup = (1.0 + k_i * z > s_i).astype(jnp.float32)
    k_sup = jnp.sum(in_sup, axis=-1, keepdims=True)
    s_sup = jnp.sum(in_sup * z, axis=-1, keepdims=True)
    tau = (s_sup - 1.0) / k_sup
    return jnp.maximum(z - tau, 0.0)


def _attention_grouping_kernel(x_ref, xT_ref, wqv_ref, wkT_ref,     # inputs
                               out_ref, wgt_ref,                    # outputs
                               qv_ref, kT_ref, s_ref,               # scratch
                               *, embed_dim, num_heads, row_tile, row_chunk,
                               compute_dtype):
    D, H, TR, RC = embed_dim, num_heads, row_tile, row_chunk
    cd = compute_dtype
    scale = 1.0 / math.sqrt(D * H)
    inv_h = 1.0 / H

    # ---- per-graph projections: computed once (r == 0), reused by all row
    # tiles of this graph.  Grid axis 1 is "arbitrary", so within a core every
    # graph's r == 0 step runs before its r > 0 steps (megacore may only split
    # the batch axis -> no stale-scratch hazard).
    @pl.when(pl.program_id(1) == 0)
    def _():
        # Q and V for all N source nodes: one (N, D) x (D, 2*H*D) MXU push.
        qv_ref[...] = jnp.dot(x_ref[...], wqv_ref[...],
                              preferred_element_type=jnp.float32).astype(cd)
        # K^T produced directly as Wk^T @ x^T -> (H*D, N); no transpose op is
        # ever emitted, and the score matmul below stays in canonical form.
        kT_ref[...] = jnp.dot(wkT_ref[...], xT_ref[...],
                              preferred_element_type=jnp.float32).astype(cd)

    r0 = pl.multiple_of(pl.program_id(1) * TR, TR)   # destination-row tile start

    acc = jnp.zeros((TR, D), jnp.float32)
    for h in range(H):                                # H is static & small
        q = qv_ref[pl.ds(r0, TR), pl.ds(h * D, D)]              # (TR, D) cd
        kT = kT_ref[pl.ds(h * D, D), :]                         # (D,  N) cd
        v = qv_ref[:, pl.ds((H + h) * D, D)]                    # (N,  D) cd
        # score[n, m] = <q_n, k_m> / sqrt(D*H)
        s = jnp.dot(q, kT, preferred_element_type=jnp.float32) * scale   # (TR, N) f32

        if RC == TR:
            w = _sparsemax_rows(s)                              # (TR, N) f32
            wgt_ref[h, :, :] = w.astype(wgt_ref.dtype)
        else:
            # Bound the (rows, N, N) sparsemax temporary: process RC rows at a
            # time inside a real loop so live vregs / spill VMEM stay capped.
            s_ref[...] = s

            @pl.loop(0, TR // RC)
            def _(c):
                r = pl.multiple_of(c * RC, RC)
                wc = _sparsemax_rows(s_ref[pl.ds(r, RC), :])
                wgt_ref[h, pl.ds(r, RC), :] = wc.astype(wgt_ref.dtype)

            w = wgt_ref[h, :, :].astype(jnp.float32)

        acc = acc + jnp.dot(w.astype(cd), v,
                            preferred_element_type=jnp.float32)
    out_ref[...] = (acc * inv_h).astype(out_ref.dtype)          # mean over heads


def _default_vmem_limit_bytes():
    """Per-generation VMEM budget: ~3/4 of capacity, capped at 100 MiB."""
    cap = None
    try:
        cap = getattr(pltpu.get_tpu_info(), "vmem_capacity_bytes", None)
    except Exception:
        cap = None
    if not cap:
        cap = 64 * 1024 * 1024   # conservative default (v7x per-TC VMEM)
    return min(int(cap) * 3 // 4, 100 * 1024 * 1024)


def attention_grouping(x, wq, wk, wv, *, num_heads,
                       compute_dtype=jnp.bfloat16, row_tile=None,
                       sparsemax_chunk=8, weight_dtype=jnp.float32,
                       transpose_weight=True):
    """Returns (output (B,N,D) f32, weight (B,N,max_num_allies,H) weight_dtype).

    With transpose_weight=False the weights are returned in the kernel-native
    lane-dense layout (B, H, N, N) (saves a full HBM pass on v5e).
    """
    squeeze = (x.ndim == 2)
    if squeeze:
        x = x[None]
    B, N, D = x.shape
    H = num_heads
    assert wq.shape == (D, H * D) and wk.shape == wq.shape and wv.shape == wq.shape

    if row_tile is None:
        row_tile = N if N <= 128 else 128
    TR = row_tile
    assert N % TR == 0 and (TR == N or TR % 8 == 0), \
        "row_tile must divide N and be a multiple of 8"
    RC = sparsemax_chunk if (TR > sparsemax_chunk and TR % sparsemax_chunk == 0) else TR

    # Cast once in the wrapper (halves the weight/x DMA in bf16).
    w_qv = jnp.concatenate([wq, wv], axis=1).astype(compute_dtype)     # (D, 2*H*D)
    w_kT = wk.T.astype(compute_dtype)                                  # (H*D, D)
    x_c = x.astype(compute_dtype)
    xT_c = jnp.transpose(x, (0, 2, 1)).astype(compute_dtype)           # (B, D, N)

    kernel = partial(_attention_grouping_kernel, embed_dim=D, num_heads=H,
                     row_tile=TR, row_chunk=RC, compute_dtype=compute_dtype)

    out, w_bhnn = pl.pallas_call(
        kernel,
        out_shape=(jax.ShapeDtypeStruct((B, N, D), jnp.float32),
                   jax.ShapeDtypeStruct((B, H, N, N), weight_dtype)),
        grid_spec=pltpu.PrefetchScalarGridSpec(
            num_scalar_prefetch=0,
            grid=(B, N // TR),
            in_specs=[
                # per-graph node features (full N so every dst tile sees all srcs)
                pl.BlockSpec((None, N, D), lambda b, r: (b, 0, 0)),
                # pre-transposed node features for the K^T projection
                pl.BlockSpec((None, D, N), lambda b, r: (b, 0, 0)),
                # fused [Wq | Wv], resident across the grid
                pl.BlockSpec((D, 2 * H * D), lambda b, r: (0, 0)),
                # Wk^T, resident across the grid
                pl.BlockSpec((H * D, D), lambda b, r: (0, 0)),
            ],
            out_specs=(
                pl.BlockSpec((None, TR, D), lambda b, r: (b, r, 0)),
                pl.BlockSpec((None, H, TR, N), lambda b, r: (b, 0, r, 0)),
            ),
            scratch_shapes=[
                pltpu.VMEM((N, 2 * H * D), compute_dtype),   # Q | V per graph
                pltpu.VMEM((H * D, N), compute_dtype),       # K^T per graph
                pltpu.VMEM((TR, N), jnp.float32),            # staged scores
            ],
        ),
        compiler_params=pltpu.CompilerParams(
            # axis 1 MUST be "arbitrary": the r==0 step fills the per-graph
            # projection scratch reused by r>0 steps of the same graph.
            dimension_semantics=("parallel", "arbitrary"),
            vmem_limit_bytes=_default_vmem_limit_bytes(),
        ),
    )(x_c, xT_c, w_qv, w_kT)

    if transpose_weight:
        # Torch convention (B, N, max_num_allies, H); boundary-only layout change.
        weight = jnp.transpose(w_bhnn, (0, 2, 3, 1))
    else:
        weight = w_bhnn
    if squeeze:
        return out[0], weight[0]
    return out, weight


# ----------------------------- pure-JAX reference -----------------------------

def _sparsemax_ref(z):
    """Classic sort-based sparsemax (independent of the kernel formulation)."""
    z = z.astype(jnp.float32)
    z_sorted = -jnp.sort(-z, axis=-1)                       # descending
    z_cumsum = jnp.cumsum(z_sorted, axis=-1)
    ks = jnp.arange(1, z.shape[-1] + 1, dtype=jnp.float32)
    support = ks * z_sorted > (z_cumsum - 1.0)
    k = jnp.sum(support.astype(jnp.float32), axis=-1, keepdims=True)
    s = jnp.take_along_axis(z_cumsum, k.astype(jnp.int32) - 1, axis=-1)
    tau = (s - 1.0) / k
    return jnp.maximum(z - tau, 0.0)


def reference_forward(x, wq, wk, wv, num_heads):
    """Pure-JAX (XLA) reference mirroring the PyTorch module semantics."""
    B, N, D = x.shape
    H = num_heads
    q = (x @ wq).reshape(B, N, H, D)
    k = (x @ wk).reshape(B, N, H, D)
    v = (x @ wv).reshape(B, N, H, D)
    score = jnp.einsum('bnhd,bmhd->bnmh', q, k) / math.sqrt(D * H)   # (B, N, ne, H)
    z = jnp.transpose(score, (0, 1, 3, 2)).reshape(-1, N)            # sparsemax over ne
    w = _sparsemax_ref(z).reshape(B, N, H, N)
    w = jnp.transpose(w, (0, 1, 3, 2))                               # (B, N, ne, H)
    out = jnp.einsum('bnmh,bmhd->bnhd', w, v).mean(axis=2)           # (B, N, D)
    return out, w


if __name__ == "__main__":
    # graphs (BatchedDGLGraph of fully-connected ally graphs), allies, embed, heads
    B, N, D, H = 2, 8, 32, 2

    key = jax.random.PRNGKey(0)
    kx, kq, kk, kv, kx2 = jax.random.split(key, 5)
    bound = 1.0 / math.sqrt(D)  # torch.nn.Linear default init range
    x = jax.random.normal(kx, (B, N, D), jnp.float32)
    wq = jax.random.uniform(kq, (D, H * D), jnp.float32, -bound, bound)
    wk = jax.random.uniform(kk, (D, H * D), jnp.float32, -bound, bound)
    wv = jax.random.uniform(kv, (D, H * D), jnp.float32, -bound, bound)

    out_ref, w_ref = reference_forward(x, wq, wk, wv, H)

    # 1) f32 compute path: must match the XLA reference tightly.
    out32, wgt32 = attention_grouping(x, wq, wk, wv, num_heads=H,
                                      compute_dtype=jnp.float32)
    out32 = jax.block_until_ready(out32)
    wgt32 = jax.block_until_ready(wgt32)
    assert out32.shape == (B, N, D) and wgt32.shape == (B, N, N, H)
    assert jnp.allclose(out32, out_ref, atol=2e-5, rtol=2e-5)
    assert jnp.allclose(wgt32, w_ref, atol=2e-5, rtol=2e-5)
    assert jnp.allclose(wgt32.sum(axis=2), 1.0, atol=1e-5)   # sparsemax sums to 1

    # 2) bf16 matmul path (MXU-native on v5e/v6e/v7x), f32 accumulation.
    out_bf, wgt_bf = attention_grouping(x, wq, wk, wv, num_heads=H,
                                        compute_dtype=jnp.bfloat16)
    out_bf = jax.block_until_ready(out_bf)
    wgt_bf = jax.block_until_ready(wgt_bf)
    assert out_bf.shape == (B, N, D) and wgt_bf.shape == (B, N, N, H)
    assert jnp.allclose(out_bf, out_ref, atol=5e-2, rtol=5e-2)
    assert jnp.allclose(wgt_bf, w_ref, atol=5e-2, rtol=5e-2)
    assert jnp.allclose(wgt_bf.sum(axis=2), 1.0, atol=1e-4)
    assert bool(jnp.all(wgt_bf >= 0.0))

    # 3) larger graph: exercises the project-once guard across multiple row
    #    tiles (grid axis 1 > 1) and the chunked sparsemax path.
    B2, N2 = 1, 128
    x2 = jax.random.normal(kx2, (B2, N2, D), jnp.float32)
    out2_ref, w2_ref = reference_forward(x2, wq, wk, wv, H)
    out2, wgt2 = attention_grouping(x2, wq, wk, wv, num_heads=H,
                                    compute_dtype=jnp.float32, row_tile=64)
    out2 = jax.block_until_ready(out2)
    wgt2 = jax.block_until_ready(wgt2)
    assert out2.shape == (B2, N2, D) and wgt2.shape == (B2, N2, N2, H)
    assert jnp.allclose(out2, out2_ref, atol=1e-4, rtol=1e-4)
    assert jnp.allclose(wgt2, w2_ref, atol=1e-4, rtol=1e-4)
    assert jnp.allclose(wgt2.sum(axis=2), 1.0, atol=1e-4)

    print("KERNEL_OK")
</pallas_src>

<mosaic_0001>
module attributes {stable_mosaic.version = 11 : i64} {
  func.func @_attention_grouping_kernel(%arg0: i32, %arg1: i32, %arg2: memref<1x8x32xf32, #tpu.memory_space<vmem>>, %arg3: memref<1x32x8xf32, #tpu.memory_space<vmem>>, %arg4: memref<32x128xf32, #tpu.memory_space<vmem>>, %arg5: memref<64x32xf32, #tpu.memory_space<vmem>>, %arg6: memref<1x8x32xf32, #tpu.memory_space<vmem>>, %arg7: memref<1x2x8x8xf32, #tpu.memory_space<vmem>>, %arg8: memref<8x128xf32, #tpu.memory_space<vmem>>, %arg9: memref<64x8xf32, #tpu.memory_space<vmem>>, %arg10: memref<8x8xf32, #tpu.memory_space<vmem>>) attributes {dimension_semantics = [#tpu.dimension_semantics<parallel>, #tpu.dimension_semantics<arbitrary>], iteration_bounds = array<i64: 2, 1>, scalar_prefetch = 0 : i64, scratch_operands = 3 : i64, tpu.core_type = #tpu.core_type<tc>, window_params = [{transform_indices = @transform_0, window_bounds = array<i64: 1, 8, 32>}, {transform_indices = @transform_1, window_bounds = array<i64: 1, 32, 8>}, {pipeline_mode = #tpu.pipeline_mode<synchronous>, transform_indices = @transform_2, window_bounds = array<i64: 32, 128>}, {pipeline_mode = #tpu.pipeline_mode<synchronous>, transform_indices = @transform_3, window_bounds = array<i64: 64, 32>}, {transform_indices = @transform_4, window_bounds = array<i64: 1, 8, 32>}, {transform_indices = @transform_5, window_bounds = array<i64: 1, 2, 8, 8>}]} {
    %c0_i32 = arith.constant 0 : i32
    %0 = arith.cmpi eq, %arg1, %c0_i32 : i32
    %1 = arith.extui %0 : i1 to i32
    %c0_i32_0 = arith.constant 0 : i32
    %2 = arith.cmpi ne, %1, %c0_i32_0 : i32
    scf.if %2 {
      %c0_38 = arith.constant 0 : index
      %c0_39 = arith.constant 0 : index
      %c0_40 = arith.constant 0 : index
      %95 = vector.load %arg2[%c0_38, %c0_39, %c0_40] : memref<1x8x32xf32, #tpu.memory_space<vmem>>, vector<1x8x32xf32>
      %96 = vector.shape_cast %95 : vector<1x8x32xf32> to vector<8x32xf32>
      %c0_41 = arith.constant 0 : index
      %c0_42 = arith.constant 0 : index
      %97 = vector.load %arg4[%c0_41, %c0_42] : memref<32x128xf32, #tpu.memory_space<vmem>>, vector<32x128xf32>
      %cst_43 = arith.constant dense<0.000000e+00> : vector<8x128xf32>
      %98 = tpu.matmul %96, %97, %cst_43 {dimension_numbers = #tpu.dot_dimension_numbers<[1], [0], [0], [1], [0, 0, 1, 1], [], []>} : vector<8x32xf32>, vector<32x128xf32>, vector<8x128xf32> -> vector<8x128xf32>
      %c0_44 = arith.constant 0 : index
      %c0_45 = arith.constant 0 : index
      %99 = vector.load %arg8[%c0_44, %c0_45] : memref<8x128xf32, #tpu.memory_space<vmem>>, vector<8x128xf32>
      tpu.vector_store %arg8[%c0_44, %c0_45], %98 {strides = array<i32>} : memref<8x128xf32, #tpu.memory_space<vmem>>, vector<8x128xf32>,
      %c0_46 = arith.constant 0 : index
      %c0_47 = arith.constant 0 : index
      %100 = vector.load %arg5[%c0_46, %c0_47] : memref<64x32xf32, #tpu.memory_space<vmem>>, vector<64x32xf32>
      %c0_48 = arith.constant 0 : index
      %c0_49 = arith.constant 0 : index
      %c0_50 = arith.constant 0 : index
      %101 = vector.load %arg3[%c0_48, %c0_49, %c0_50] : memref<1x32x8xf32, #tpu.memory_space<vmem>>, vector<1x32x8xf32>
      %102 = vector.shape_cast %101 : vector<1x32x8xf32> to vector<32x8xf32>
      %cst_51 = arith.constant dense<0.000000e+00> : vector<64x8xf32>
      %103 = tpu.matmul %100, %102, %cst_51 {dimension_numbers = #tpu.dot_dimension_numbers<[1], [0], [0], [1], [0, 0, 1, 1], [], []>} : vector<64x32xf32>, vector<32x8xf32>, vector<64x8xf32> -> vector<64x8xf32>
      %c0_52 = arith.constant 0 : index
      %c0_53 = arith.constant 0 : index
      %104 = vector.load %arg9[%c0_52, %c0_53] : memref<64x8xf32, #tpu.memory_space<vmem>>, vector<64x8xf32>
      tpu.vector_store %arg9[%c0_52, %c0_53], %103 {strides = array<i32>} : memref<64x8xf32, #tpu.memory_space<vmem>>, vector<64x8xf32>,
    } else {
    }
    %c8_i32 = arith.constant 8 : i32
    %3 = arith.muli %arg1, %c8_i32 : i32
    %4 = tpu.assume_multiple %3, 8 : i32
    %cst = arith.constant 0.000000e+00 : f32
    %5 = vector.broadcast %cst : f32 to vector<8x32xf32>
    %6 = arith.index_cast %4 : i32 to index
    %c0 = arith.constant 0 : index
    %7 = vector.load %arg8[%6, %c0] : memref<8x128xf32, #tpu.memory_space<vmem>>, vector<8x32xf32>
    %c0_1 = arith.constant 0 : index
    %c0_2 = arith.constant 0 : index
    %8 = vector.load %arg9[%c0_1, %c0_2] : memref<64x8xf32, #tpu.memory_space<vmem>>, vector<32x8xf32>
    %c0_3 = arith.constant 0 : index
    %c64 = arith.constant 64 : index
    %9 = vector.load %arg8[%c0_3, %c64] : memref<8x128xf32, #tpu.memory_space<vmem>>, vector<8x32xf32>
    %cst_4 = arith.constant dense<0.000000e+00> : vector<8x8xf32>
    %10 = tpu.matmul %7, %8, %cst_4 {dimension_numbers = #tpu.dot_dimension_numbers<[1], [0], [0], [1], [0, 0, 1, 1], [], []>} : vector<8x32xf32>, vector<32x8xf32>, vector<8x8xf32> -> vector<8x8xf32>
    %cst_5 = arith.constant 1.250000e-01 : f32
    %11 = vector.broadcast %cst_5 : f32 to vector<8x8xf32>
    %12 = arith.mulf %10, %11 : vector<8x8xf32>
    %13 = vector.shape_cast %12 : vector<8x8xf32> to vector<8x1x8xf32>
    %14 = vector.shape_cast %12 : vector<8x8xf32> to vector<8x8x1xf32>
    %15 = vector.broadcast %13 : vector<8x1x8xf32> to vector<8x8x8xf32>
    %16 = vector.broadcast %14 : vector<8x8x1xf32> to vector<8x8x8xf32>
    %17 = arith.cmpf oge, %15, %16 : vector<8x8x8xf32>
    %18 = arith.extui %17 : vector<8x8x8xi1> to vector<8x8x8xi32>
    %19 = arith.sitofp %18 : vector<8x8x8xi32> to vector<8x8x8xf32>
    %cst_6 = arith.constant dense<0.000000e+00> : vector<8x8xf32>
    %20 = vector.multi_reduction <add>, %19, %cst_6 [2] : vector<8x8x8xf32> to vector<8x8xf32>
    %21 = vector.shape_cast %12 : vector<8x8xf32> to vector<8x1x8xf32>
    %22 = vector.broadcast %21 : vector<8x1x8xf32> to vector<8x8x8xf32>
    %23 = arith.mulf %19, %22 : vector<8x8x8xf32>
    %cst_7 = arith.constant dense<0.000000e+00> : vector<8x8xf32>
    %24 = vector.multi_reduction <add>, %23, %cst_7 [2] : vector<8x8x8xf32> to vector<8x8xf32>
    %25 = arith.mulf %20, %12 : vector<8x8xf32>
    %cst_8 = arith.constant 1.000000e+00 : f32
    %26 = vector.broadcast %cst_8 : f32 to vector<8x8xf32>
    %27 = arith.addf %26, %25 : vector<8x8xf32>
    %28 = arith.cmpf ogt, %27, %24 : vector<8x8xf32>
    %29 = arith.extui %28 : vector<8x8xi1> to vector<8x8xi32>
    %30 = arith.sitofp %29 : vector<8x8xi32> to vector<8x8xf32>
    %cst_9 = arith.constant dense<0.000000e+00> : vector<8xf32>
    %31 = vector.multi_reduction <add>, %30, %cst_9 [1] : vector<8x8xf32> to vector<8xf32>
    %32 = vector.shape_cast %31 : vector<8xf32> to vector<8x1xf32>
    %33 = arith.mulf %30, %12 : vector<8x8xf32>
    %cst_10 = arith.constant dense<0.000000e+00> : vector<8xf32>
    %34 = vector.multi_reduction <add>, %33, %cst_10 [1] : vector<8x8xf32> to vector<8xf32>
    %35 = vector.shape_cast %34 : vector<8xf32> to vector<8x1xf32>
    %cst_11 = arith.constant 1.000000e+00 : f32
    %36 = vector.broadcast %cst_11 : f32 to vector<8x1xf32>
    %37 = arith.subf %35, %36 : vector<8x1xf32>
    %38 = arith.divf %37, %32 : vector<8x1xf32>
    %39 = vector.broadcast %38 : vector<8x1xf32> to vector<8x8xf32>
    %40 = arith.subf %12, %39 : vector<8x8xf32>
    %cst_12 = arith.constant 0.000000e+00 : f32
    %41 = vector.broadcast %cst_12 : f32 to vector<8x8xf32>
    %42 = arith.maximumf %40, %41 : vector<8x8xf32>
    %c0_13 = arith.constant 0 : index
    %c0_14 = arith.constant 0 : index
    %c0_15 = arith.constant 0 : index
    %c0_16 = arith.constant 0 : index
    %43 = vector.load %arg7[%c0_13, %c0_14, %c0_15, %c0_16] : memref<1x2x8x8xf32, #tpu.memory_space<vmem>>, vector<1x1x8x8xf32>
    %44 = vector.shape_cast %43 : vector<1x1x8x8xf32> to vector<8x8xf32>
    %45 = vector.shape_cast %42 : vector<8x8xf32> to vector<1x1x8x8xf32>
    tpu.vector_store %arg7[%c0_13, %c0_14, %c0_15, %c0_16], %45 {strides = array<i32>} : memref<1x2x8x8xf32, #tpu.memory_space<vmem>>, vector<1x1x8x8xf32>,
    %cst_17 = arith.constant dense<0.000000e+00> : vector<8x32xf32>
    %46 = tpu.matmul %42, %9, %cst_17 {dimension_numbers = #tpu.dot_dimension_numbers<[1], [0], [0], [1], [0, 0, 1, 1], [], []>} : vector<8x8xf32>, vector<8x32xf32>, vector<8x32xf32> -> vector<8x32xf32>
    %47 = arith.addf %5, %46 : vector<8x32xf32>
    %48 = arith.index_cast %4 : i32 to index
    %c32 = arith.constant 32 : index
    %49 = vector.load %arg8[%48, %c32] : memref<8x128xf32, #tpu.memory_space<vmem>>, vector<8x32xf32>
    %c32_18 = arith.constant 32 : index
    %c0_19 = arith.constant 0 : index
    %50 = vector.load %arg9[%c32_18, %c0_19] : memref<64x8xf32, #tpu.memory_space<vmem>>, vector<32x8xf32>
    %c0_20 = arith.constant 0 : index
    %c96 = arith.constant 96 : index
    %51 = vector.load %arg8[%c0_20, %c96] : memref<8x128xf32, #tpu.memory_space<vmem>>, vector<8x32xf32>
    %cst_21 = arith.constant dense<0.000000e+00> : vector<8x8xf32>
    %52 = tpu.matmul %49, %50, %cst_21 {dimension_numbers = #tpu.dot_dimension_numbers<[1], [0], [0], [1], [0, 0, 1, 1], [], []>} : vector<8x32xf32>, vector<32x8xf32>, vector<8x8xf32> -> vector<8x8xf32>
    %cst_22 = arith.constant 1.250000e-01 : f32
    %53 = vector.broadcast %cst_22 : f32 to vector<8x8xf32>
    %54 = arith.mulf %52, %53 : vector<8x8xf32>
    %55 = vector.shape_cast %54 : vector<8x8xf32> to vector<8x1x8xf32>
    %56 = vector.shape_cast %54 : vector<8x8xf32> to vector<8x8x1xf32>
    %57 = vector.broadcast %55 : vector<8x1x8xf32> to vector<8x8x8xf32>
    %58 = vector.broadcast %56 : vector<8x8x1xf32> to vector<8x8x8xf32>
    %59 = arith.cmpf oge, %57, %58 : vector<8x8x8xf32>
    %60 = arith.extui %59 : vector<8x8x8xi1> to vector<8x8x8xi32>
    %61 = arith.sitofp %60 : vector<8x8x8xi32> to vector<8x8x8xf32>
    %cst_23 = arith.constant dense<0.000000e+00> : vector<8x8xf32>
    %62 = vector.multi_reduction <add>, %61, %cst_23 [2] : vector<8x8x8xf32> to vector<8x8xf32>
    %63 = vector.shape_cast %54 : vector<8x8xf32> to vector<8x1x8xf32>
    %64 = vector.broadcast %63 : vector<8x1x8xf32> to vector<8x8x8xf32>
    %65 = arith.mulf %61, %64 : vector<8x8x8xf32>
    %cst_24 = arith.constant dense<0.000000e+00> : vector<8x8xf32>
    %66 = vector.multi_reduction <add>, %65, %cst_24 [2] : vector<8x8x8xf32> to vector<8x8xf32>
    %67 = arith.mulf %62, %54 : vector<8x8xf32>
    %cst_25 = arith.constant 1.000000e+00 : f32
    %68 = vector.broadcast %cst_25 : f32 to vector<8x8xf32>
    %69 = arith.addf %68, %67 : vector<8x8xf32>
    %70 = arith.cmpf ogt, %69, %66 : vector<8x8xf32>
    %71 = arith.extui %70 : vector<8x8xi1> to vector<8x8xi32>
    %72 = arith.sitofp %71 : vector<8x8xi32> to vector<8x8xf32>
    %cst_26 = arith.constant dense<0.000000e+00> : vector<8xf32>
    %73 = vector.multi_reduction <add>, %72, %cst_26 [1] : vector<8x8xf32> to vector<8xf32>
    %74 = vector.shape_cast %73 : vector<8xf32> to vector<8x1xf32>
    %75 = arith.mulf %72, %54 : vector<8x8xf32>
    %cst_27 = arith.constant dense<0.000000e+00> : vector<8xf32>
    %76 = vector.multi_reduction <add>, %75, %cst_27 [1] : vector<8x8xf32> to vector<8xf32>
    %77 = vector.shape_cast %76 : vector<8xf32> to vector<8x1xf32>
    %cst_28 = arith.constant 1.000000e+00 : f32
    %78 = vector.broadcast %cst_28 : f32 to vector<8x1xf32>
    %79 = arith.subf %77, %78 : vector<8x1xf32>
    %80 = arith.divf %79, %74 : vector<8x1xf32>
    %81 = vector.broadcast %80 : vector<8x1xf32> to vector<8x8xf32>
    %82 = arith.subf %54, %81 : vector<8x8xf32>
    %cst_29 = arith.constant 0.000000e+00 : f32
    %83 = vector.broadcast %cst_29 : f32 to vector<8x8xf32>
    %84 = arith.maximumf %82, %83 : vector<8x8xf32>
    %c0_30 = arith.constant 0 : index
    %c1 = arith.constant 1 : index
    %c0_31 = arith.constant 0 : index
    %c0_32 = arith.constant 0 : index
    %85 = vector.load %arg7[%c0_30, %c1, %c0_31, %c0_32] : memref<1x2x8x8xf32, #tpu.memory_space<vmem>>, vector<1x1x8x8xf32>
    %86 = vector.shape_cast %85 : vector<1x1x8x8xf32> to vector<8x8xf32>
    %87 = vector.shape_cast %84 : vector<8x8xf32> to vector<1x1x8x8xf32>
    tpu.vector_store %arg7[%c0_30, %c1, %c0_31, %c0_32], %87 {strides = array<i32>} : memref<1x2x8x8xf32, #tpu.memory_space<vmem>>, vector<1x1x8x8xf32>,
    %cst_33 = arith.constant dense<0.000000e+00> : vector<8x32xf32>
    %88 = tpu.matmul %84, %51, %cst_33 {dimension_numbers = #tpu.dot_dimension_numbers<[1], [0], [0], [1], [0, 0, 1, 1], [], []>} : vector<8x8xf32>, vector<8x32xf32>, vector<8x32xf32> -> vector<8x32xf32>
    %89 = arith.addf %47, %88 : vector<8x32xf32>
    %cst_34 = arith.constant 5.000000e-01 : f32
    %90 = vector.broadcast %cst_34 : f32 to vector<8x32xf32>
    %91 = arith.mulf %89, %90 : vector<8x32xf32>
    %c0_35 = arith.constant 0 : index
    %c0_36 = arith.constant 0 : index
    %c0_37 = arith.constant 0 : index
    %92 = vector.load %arg6[%c0_35, %c0_36, %c0_37] : memref<1x8x32xf32, #tpu.memory_space<vmem>>, vector<1x8x32xf32>
    %93 = vector.shape_cast %92 : vector<1x8x32xf32> to vector<8x32xf32>
    %94 = vector.shape_cast %91 : vector<8x32xf32> to vector<1x8x32xf32>
    tpu.vector_store %arg6[%c0_35, %c0_36, %c0_37], %94 {strides = array<i32>} : memref<1x8x32xf32, #tpu.memory_space<vmem>>, vector<1x8x32xf32>,
    return
  }
  func.func @transform_0(%arg0: i32, %arg1: i32) -> (i32, i32, i32) {
    %c0_i32 = arith.constant 0 : i32
    %c0_i32_0 = arith.constant 0 : i32
    %c0_i32_1 = arith.constant 0 : i32
    return %arg0, %c0_i32, %c0_i32_0 : i32, i32, i32
  }
  func.func @transform_1(%arg0: i32, %arg1: i32) -> (i32, i32, i32) {
    %c0_i32 = arith.constant 0 : i32
    %c0_i32_0 = arith.constant 0 : i32
    %c0_i32_1 = arith.constant 0 : i32
    return %arg0, %c0_i32, %c0_i32_0 : i32, i32, i32
  }
  func.func @transform_2(%arg0: i32, %arg1: i32) -> (i32, i32) {
    %c0_i32 = arith.constant 0 : i32
    %c0_i32_0 = arith.constant 0 : i32
    %c0_i32_1 = arith.constant 0 : i32
    return %c0_i32, %c0_i32_0 : i32, i32
  }
  func.func @transform_3(%arg0: i32, %arg1: i32) -> (i32, i32) {
    %c0_i32 = arith.constant 0 : i32
    %c0_i32_0 = arith.constant 0 : i32
    %c0_i32_1 = arith.constant 0 : i32
    return %c0_i32, %c0_i32_0 : i32, i32
  }
  func.func @transform_4(%arg0: i32, %arg1: i32) -> (i32, i32, i32) {
    %c0_i32 = arith.constant 0 : i32
    %c0_i32_0 = arith.constant 0 : i32
    return %arg0, %arg1, %c0_i32 : i32, i32, i32
  }
  func.func @transform_5(%arg0: i32, %arg1: i32) -> (i32, i32, i32, i32) {
    %c0_i32 = arith.constant 0 : i32
    %c0_i32_0 = arith.constant 0 : i32
    %c0_i32_1 = arith.constant 0 : i32
    return %arg0, %c0_i32, %arg1, %c0_i32_0 : i32, i32, i32, i32
  }
}

</mosaic_0001>

<llo_original>
// kernel: tpu_custom_call.1
$region0: #{tpu_custom_call.1}
  #allocation0 [shape = 'u32[]', space=smem, size = 0x4, offset = 0x4, fixed_abs, tag = 'smem constant byte address 0x4 - core index']
  #allocation1 [shape = 'u32[144,128]{1,0:T(1,128)}', space=vmem, size = 0x12000, scoped, tag = 'internal scratch']
  #allocation2 [shape = 'f32[8,128]{1,0:T(8,128)}', space=vmem, size = 0x1000, scoped, tag = 'scratch operand']
  #allocation3 [shape = 'f32[64,8]{1,0:T(8,128)}', space=vmem, size = 0x8000, scoped, tag = 'scratch operand']
  #allocation4 [shape = 'f32[8,8]{1,0:T(8,128)}', space=vmem, size = 0x1000, scoped, tag = 'scratch operand']
  %s0 = inlined_call_operand.vmem [shape: f32[2,8,32], index: 0, kind: input, shape index: {}]
  %s1 = inlined_call_operand.vmem [shape: f32[2,32,8], index: 1, kind: input, shape index: {}]
  %s2 = inlined_call_operand.vmem [shape: f32[32,128], index: 2, kind: input, shape index: {}]
  %s3 = inlined_call_operand.vmem [shape: f32[64,32], index: 3, kind: input, shape index: {}]
  %s4 = inlined_call_operand.hbm [shape: f32[2,8,32], index: 4, kind: output, shape index: {0}]
  %s5 = inlined_call_operand.hbm [shape: f32[2,2,8,8], index: 5, kind: output, shape index: {1}]
  %6 = xla_tuple %s4, %s5
  %s7 = sld [smem:[#allocation0]]
  $region61: #{tpu_custom_call.1} parent=0
    _
  %s9 = ssub.s32 1, %s7
  %s10 = scalar_select 0, %s9, %s7
  $region1: #{tpu_custom_call.1} parent=0
    #allocation5 [shape = 'u8[8192]{0}', space=vmem, size = 0x2000, scoped, tag = 'output window, operand 0']
    #allocation6 [shape = 's32[2]{0}', space=sflag, size = 0x8, scoped, tag = 'scoped memory for tpu_custom_call.1']
    #allocation7 [shape = 'u8[16384]{0}', space=vmem, size = 0x4000, scoped, tag = 'output window, operand 1']
    #allocation8 [shape = 's32[2]{0}', space=sflag, size = 0x8, scoped, tag = 'scoped memory for tpu_custom_call.1']
    %11 = vsyncpa [#allocation6], 0
    %s12 = scalar_lea.sflag [#allocation6], 1
    %13 = vsyncpa %s12, 0
    %14 = vsyncpa [#allocation8], 0
    %s15 = scalar_lea.sflag [#allocation8], 1
    %16 = vsyncpa %s15, 0
    loop: start=0, step=1, limit=4
    $region2: #{tpu_custom_call.1} parent=1 // loop_pre_header
      _
    $region3: #{tpu_custom_call.1} parent=1 // loop_header
      %s18 = sphi 0, %s22
      %p19 = scmp.ge.s32.totalorder %s18, 4
      %s25 = sphi 0, %s37
      %s26 = sphi 0, %s33
      %s27 = sphi 0, %s25
      %s28 = sphi 0, %s26
      %s29 = sphi 0, %s27
      %s30 = sphi 0, %s28
      %s40 = sphi 0, %s42
      %s43 = sphi 0, %s40
      %s44 = sphi 0, %s43
      %s60 = sphi 0, %s44
      %s66 = sphi 0, %s68
      %s69 = sphi 0, %s66
      %s70 = sphi 0, %s69
      %s86 = sphi 0, %s70
      %s90 = sphi 0, %s90
      %s92 = sphi 0, %s90
      %s93 = sphi 0, %s92
      %s107 = sphi 0, %s93
      %s111 = sphi 0, %s111
      %s113 = sphi 0, %s111
      %s114 = sphi 0, %s113
      %s128 = sphi 0, %s114
      %s136 = sphi 0, %s138
      %s139 = sphi 0, %s136
      %s140 = sphi 0, %s139
      %s156 = sphi 0, %s140
      %s164 = sphi 0, %s166
      %s167 = sphi 0, %s164
      %s168 = sphi 0, %s167
      %s184 = sphi 0, %s168
    $region4: #{tpu_custom_call.1} parent=1 // loop_header_branch
      %21 = sbr.rel (%p19) target = $region8
    $region5: #{tpu_custom_call.1} parent=1 // loop_body
      %s23 = ssub.s32 %s18, 1
      %s24 = ssub.s32 %s18, 2
      %s31 = sadd.s32 1, %s26
      %p32 = scmp.ge.s32.totalorder %s31, 1
      %s33 = scalar_select %p32, 0, %s31
      %s34 = sadd.s32 1, %s25
      %s35 = scalar_select %p32, %s34, %s25
      %p36 = scmp.ge.s32.totalorder %s35, 2
      %s37 = scalar_select %p36, 0, %s35
      %s38 = ssub.s32 %s25, %s37
      %p39 = scmp.eq.s32.totalorder %s38, 0
      %s41 = sadd.s32 %s40, 1
      %s42 = scalar_select %p39, %s40, %s41
      %p45 = pneg %p39
      %p46 = scmp.eq.s32.totalorder %s18, 1
      %p47 = por %p45, %p46
      %p48 = scmp.ne.s32.totalorder %s40, %s43
      %p49 = scmp.eq.s32.totalorder %s18, 0
      %p50 = por %p48, %p49
      %p51 = scmp.ne.s32.totalorder %s40, %s43
      %p52 = scmp.eq.s32.totalorder %s23, 1
      %p53 = por %p51, %p52
      %p54 = scmp.ne.s32.totalorder %s43, %s44
      %p55 = scmp.eq.s32.totalorder %s23, 0
      %p56 = por %p54, %p55
      %p57 = scmp.ne.s32.totalorder %s43, %s44
      %p58 = scmp.eq.s32.totalorder %s24, 1
      %p59 = por %p57, %p58
      %p61 = scmp.ne.s32.totalorder %s44, %s60
      %p62 = scmp.eq.s32.totalorder %s24, 0
      %p63 = por %p61, %p62
      %s64 = ssub.s32 %s25, %s37
      %p65 = scmp.eq.s32.totalorder %s64, 0
      %s67 = sadd.s32 %s66, 1
      %s68 = scalar_select %p65, %s66, %s67
      %p71 = pneg %p65
      %p72 = scmp.eq.s32.totalorder %s18, 1
      %p73 = por %p71, %p72
      %p74 = scmp.ne.s32.totalorder %s66, %s69
      %p75 = scmp.eq.s32.totalorder %s18, 0
      %p76 = por %p74, %p75
      %p77 = scmp.ne.s32.totalorder %s66, %s69
      %p78 = scmp.eq.s32.totalorder %s23, 1
      %p79 = por %p77, %p78
      %p80 = scmp.ne.s32.totalorder %s69, %s70
      %p81 = scmp.eq.s32.totalorder %s23, 0
      %p82 = por %p80, %p81
      %p83 = scmp.ne.s32.totalorder %s69, %s70
      %p84 = scmp.eq.s32.totalorder %s24, 1
      %p85 = por %p83, %p84
      %p87 = scmp.ne.s32.totalorder %s70, %s86
      %p88 = scmp.eq.s32.totalorder %s24, 0
      %p89 = por %p87, %p88
      %s91 = sadd.s32 %s90, 1
      %p94 = scmp.eq.s32.totalorder %s18, 1
      %p95 = scmp.ne.s32.totalorder %s90, %s92
      %p96 = scmp.eq.s32.totalorder %s18, 0
      %p97 = por %p95, %p96
      %p98 = scmp.ne.s32.totalorder %s90, %s92
      %p99 = scmp.eq.s32.totalorder %s23, 1
      %p100 = por %p98, %p99
      %p101 = scmp.ne.s32.totalorder %s92, %s93
      %p102 = scmp.eq.s32.totalorder %s23, 0
      %p103 = por %p101, %p102
      %p104 = scmp.ne.s32.totalorder %s92, %s93
      %p105 = scmp.eq.s32.totalorder %s24, 1
      %p106 = por %p104, %p105
      %p108 = scmp.ne.s32.totalorder %s93, %s107
      %p109 = scmp.eq.s32.totalorder %s24, 0
      %p110 = por %p108, %p109
      %s112 = sadd.s32 %s111, 1
      %p115 = scmp.eq.s32.totalorder %s18, 1
      %p116 = scmp.ne.s32.totalorder %s111, %s113
      %p117 = scmp.eq.s32.totalorder %s18, 0
      %p118 = por %p116, %p117
      %p119 = scmp.ne.s32.totalorder %s111, %s113
      %p120 = scmp.eq.s32.totalorder %s23, 1
      %p121 = por %p119, %p120
      %p122 = scmp.ne.s32.totalorder %s113, %s114
      %p123 = scmp.eq.s32.totalorder %s23, 0
      %p124 = por %p122, %p123
      %p125 = scmp.ne.s32.totalorder %s113, %s114
      %p126 = scmp.eq.s32.totalorder %s24, 1
      %p127 = por %p125, %p126
      %p129 = scmp.ne.s32.totalorder %s114, %s128
      %p130 = scmp.eq.s32.totalorder %s24, 0
      %p131 = por %p129, %p130
      %s132 = ssub.s32 %s25, %s37
      %s133 = ssub.s32 %s26, %s33
      %s134 = sor.u32 %s132, %s133
      %p135 = scmp.eq.s32.totalorder %s134, 0
      %s137 = sadd.s32 %s136, 1
      %s138 = scalar_select %p135, %s136, %s137
      %p141 = pneg %p135
      %p142 = scmp.eq.s32.totalorder %s18, 1
      %p143 = por %p141, %p142
      %p144 = scmp.ne.s32.totalorder %s136, %s139
      %p145 = scmp.eq.s32.totalorder %s18, 0
      %p146 = por %p144, %p145
      %p147 = scmp.ne.s32.totalorder %s136, %s139
      %p148 = scmp.eq.s32.totalorder %s23, 1
      %p149 = por %p147, %p148
      %p150 = scmp.ne.s32.totalorder %s139, %s140
      %p151 = scmp.eq.s32.totalorder %s23, 0
      %p152 = por %p150, %p151
      %p153 = scmp.ne.s32.totalorder %s139, %s140
      %p154 = scmp.eq.s32.totalorder %s24, 1
      %p155 = por %p153, %p154
      %p157 = scmp.ne.s32.totalorder %s140, %s156
      %p158 = scmp.eq.s32.totalorder %s24, 0
      %p159 = por %p157, %p158
      %s160 = ssub.s32 %s25, %s37
      %s161 = ssub.s32 %s26, %s33
      %s162 = sor.u32 %s160, %s161
      %p163 = scmp.eq.s32.totalorder %s162, 0
      %s165 = sadd.s32 %s164, 1
      %s166 = scalar_select %p163, %s164, %s165
      %p169 = pneg %p163
      %p170 = scmp.eq.s32.totalorder %s18, 1
      %p171 = por %p169, %p170
      %p172 = scmp.ne.s32.totalorder %s164, %s167
      %p173 = scmp.eq.s32.totalorder %s18, 0
      %p174 = por %p172, %p173
      %p175 = scmp.ne.s32.totalorder %s164, %s167
      %p176 = scmp.eq.s32.totalorder %s23, 1
      %p177 = por %p175, %p176
      %p178 = scmp.ne.s32.totalorder %s167, %s168
      %p179 = scmp.eq.s32.totalorder %s23, 0
      %p180 = por %p178, %p179
      %p181 = scmp.ne.s32.totalorder %s167, %s168
      %p182 = scmp.eq.s32.totalorder %s24, 1
      %p183 = por %p181, %p182
      %p185 = scmp.ne.s32.totalorder %s168, %s184
      %p186 = scmp.eq.s32.totalorder %s24, 0
      %p187 = por %p185, %p186
      %p188 = scmp.le.s32.totalorder 1, %s18
      %p189 = scmp.lt.s32.totalorder %s18, 3
      %p190 = pnand %p188, %p189
      %p191 = pneg %p190
      // Predicated region
      $region9: #{tpu_custom_call.1} parent=5 // pred_check
        _
      $region10: #{tpu_custom_call.1} parent=5 // pred_check_branch
        %193 = sbr.rel (%p190) target = $region12
      $region11: #{tpu_custom_call.1} parent=5 // pred_region
        %s194 = ssub.s32 %s18, 1
        // Predicated region
        $region13: #{tpu_custom_call.1} parent=11 // pred_check
          %p195 = pneg %p103
        $region14: #{tpu_custom_call.1} parent=11 // pred_check_branch
          %197 = sbr.rel (%p195) target = $region16
        $region15: #{tpu_custom_call.1} parent=11 // pred_region
          _
        $region16: #{tpu_custom_call.1} parent=11 // pred_fallthru
          _
        // Predicated region
        $region17: #{tpu_custom_call.1} parent=11 // pred_check
          %p198 = pneg %p124
        $region18: #{tpu_custom_call.1} parent=11 // pred_check_branch
          %200 = sbr.rel (%p198) target = $region20
        $region19: #{tpu_custom_call.1} parent=11 // pred_region
          _
        $region20: #{tpu_custom_call.1} parent=11 // pred_fallthru
          _
      $region12: #{tpu_custom_call.1} parent=5 // pred_fallthru
        _
      %p201 = scmp.lt.s32.totalorder %s18, 2
      // Predicated region
      $region21: #{tpu_custom_call.1} parent=5 // pred_check
        %p202 = pneg %p201
      $region22: #{tpu_custom_call.1} parent=5 // pred_check_branch
        %204 = sbr.rel (%p202) target = $region24
      $region23: #{tpu_custom_call.1} parent=5 // pred_region
        // Predicated region
        $region25: #{tpu_custom_call.1} parent=23 // pred_check
          %p205 = pneg %p50
        $region26: #{tpu_custom_call.1} parent=23 // pred_check_branch
          %207 = sbr.rel (%p205) target = $region28
        $region27: #{tpu_custom_call.1} parent=23 // pred_region
          %p208 = scmp.lt.s32.totalorder %s25, 1
          %s209 = scalar_select %p208, %s25, 1
          %s210 = smul.addr %s209, 8
          %s211 = scalar_lea.vmem %s0, %s210
        $region28: #{tpu_custom_call.1} parent=23 // pred_fallthru
          _
        // Predicated region
        $region29: #{tpu_custom_call.1} parent=23 // pred_check
          %p212 = pneg %p76
        $region30: #{tpu_custom_call.1} parent=23 // pred_check_branch
          %214 = sbr.rel (%p212) target = $region32
        $region31: #{tpu_custom_call.1} parent=23 // pred_region
          %p215 = scmp.lt.s32.totalorder %s25, 1
          %s216 = scalar_select %p215, %s25, 1
          %s217 = smul.addr %s216, 4
          %s218 = smul.addr %s217, 8
          %s219 = scalar_lea.vmem %s1, %s218
        $region32: #{tpu_custom_call.1} parent=23 // pred_fallthru
          _
      $region24: #{tpu_custom_call.1} parent=5 // pred_fallthru
        _
      %p220 = scmp.le.s32.totalorder 1, %s18
      %p221 = scmp.lt.s32.totalorder %s18, 3
      %p222 = pnand %p220, %p221
      %p223 = pneg %p222
      // Predicated region
      $region33: #{tpu_custom_call.1} parent=5 // pred_check
        _
      $region34: #{tpu_custom_call.1} parent=5 // pred_check_branch
        %225 = sbr.rel (%p222) target = $region36
      $region35: #{tpu_custom_call.1} parent=5 // pred_region
        %s226 = ssub.s32 %s18, 1
        %p227 = scmp.lt.s32.totalorder %s27, 1
        %s228 = scalar_select %p227, %s27, 1
        %s229 = smul.addr %s228, 8
        %s230 = scalar_lea.vmem %s0, %s229
        %p231 = pneg %p56
        %p232 = pneg %p53
        %p233 = scmp.lt.s32.totalorder %s27, 1
        %s234 = scalar_select %p233, %s27, 1
        %s235 = smul.addr %s234, 4
        %s236 = smul.addr %s235, 8
        %s237 = scalar_lea.vmem %s1, %s236
        %p238 = pneg %p82
        %p239 = pneg %p79
        %p240 = pneg %p103
        %p241 = pneg %p100
        %p242 = pneg %p124
        %p243 = pneg %p121
        %p244 = pneg %p152
        %p245 = pneg %p149
        %s246 = sand.u32 %s139, 1
        %s247 = scalar_lea.sflag [#allocation6], %s246
        %s248 = sand.u32 %s139, 1
        %s249 = smul.addr %s248, 8
        %s250 = scalar_lea.vmem [#allocation5], %s249
        %p251 = pneg %p180
        %p252 = pneg %p177
        %s253 = sand.u32 %s167, 1
        %s254 = scalar_lea.sflag [#allocation8], %s253
        %s255 = sand.u32 %s167, 1
        %s256 = smul.addr %s255, 16
        %s257 = scalar_lea.vmem [#allocation7], %s256
        %p258 = scmp.lt.s32.totalorder %s27, 1
        %s259 = scalar_select %p258, %s27, 1
        %s260 = smul.addr %s259, 8
        %s261 = scalar_lea.vmem %s0, %s260
        %p262 = scmp.lt.s32.totalorder %s27, 1
        %s263 = scalar_select %p262, %s27, 1
        %s264 = smul.addr %s263, 4
        %s265 = smul.addr %s264, 8
        %s266 = scalar_lea.vmem %s1, %s265
        %p267 = scmp.eq.s32.totalorder %s28, 0
        // Predicated region
        $region37: #{tpu_custom_call.1} parent=35 // pred_check
          %p268 = pneg %p267
        $region38: #{tpu_custom_call.1} parent=35 // pred_check_branch
          %270 = sbr.rel (%p268) target = $region40
        $region39: #{tpu_custom_call.1} parent=35 // pred_region
          %v271 = vld [vmem:[%s261] sm:$0xff]
          %v272 = vld [vmem:[%s2] sm:$0xff]
          %v273 = vld [vmem:[%s2 + $0x8] sm:$0xff]
          %v274 = vld [vmem:[%s2 + $0x10] sm:$0xff]
          %v275 = vld [vmem:[%s2 + $0x18] sm:$0xff]
          %vm276 = vcmask 261120
          %v278 = vsel %vm276, %v271, 0
          %280 = vmatprep.subr.mxu0 0.0
          %281 = vmatpush1.msra.mxu0 %v272
          %282 = vmatprep.subr.mxu0 0.0
          %283 = vmatpush1.msra.mxu0 %v273
          %284 = vmatprep.subr.mxu0 0.0
          %285 = vmatpush1.msra.mxu0 %v274
          %286 = vmatprep.subr.mxu0 0.0
          %287 = vmatpush1.msra.mxu0 %v275
          %288 = vmatprep.subr.mxu0 0.0
          %289 = vmatpush1.msra.mxu0 0.0
          %290 = vmatprep.subr.mxu0 0.0
          %291 = vmatpush1.msra.mxu0 0.0
          %292 = vmatprep.subr.mxu0 0.0
          %293 = vmatpush1.msra.mxu0 0.0
          %294 = vmatprep.subr.mxu0 0.0
          %295 = vmatpush1.msra.mxu0 0.0
          %296 = vmatprep.subr.mxu0 0.0
          %297 = vmatpush1.msra.mxu0 0.0
          %298 = vmatprep.subr.mxu0 0.0
          %299 = vmatpush1.msra.mxu0 0.0
          %300 = vmatprep.subr.mxu0 0.0
          %301 = vmatpush1.msra.mxu0 0.0
          %302 = vmatprep.subr.mxu0 0.0
          %303 = vmatpush1.msra.mxu0 0.0
          %304 = vmatprep.subr.mxu0 0.0
          %305 = vmatpush1.msra.mxu0 0.0
          %306 = vmatprep.subr.mxu0 0.0
          %307 = vmatpush1.msra.mxu0 0.0
          %308 = vmatprep.subr.mxu0 0.0
          %309 = vmatpush1.msra.mxu0 0.0
          %310 = vmatprep.subr.mxu0 0.0
          %311 = vmatpush1.msra.mxu0 0.0
          %312 = vmatprep.subr.mxu0 0.0
          %313 = vmatpush1.msra.mxu0 0.0
          %314 = vmatprep.subr.mxu0 0.0
          %315 = vmatpush1.msra.mxu0 0.0
          %316 = vmatprep.subr.mxu0 0.0
          %317 = vmatpush1.msra.mxu0 0.0
          %318 = vmatprep.subr.mxu0 0.0
          %319 = vmatpush1.msra.mxu0 0.0
          %320 = vmatprep.subr.mxu0 0.0
          %321 = vmatpush1.msra.mxu0 0.0
          %322 = vmatprep.subr.mxu0 0.0
          %323 = vmatpush1.msra.mxu0 0.0
          %324 = vmatprep.subr.mxu0 0.0
          %325 = vmatpush1.msra.mxu0 0.0
          %326 = vmatprep.subr.mxu0 0.0
          %327 = vmatpush1.msra.mxu0 0.0
          %328 = vmatprep.subr.mxu0 0.0
          %329 = vmatpush1.msra.mxu0 0.0
          %330 = vmatprep.subr.mxu0 0.0
          %331 = vmatpush1.msra.mxu0 0.0
          %332 = vmatprep.subr.mxu0 0.0
          %333 = vmatpush1.msra.mxu0 0.0
          %334 = vmatprep.subr.mxu0 0.0
          %335 = vmatpush1.msra.mxu0 0.0
          %336 = vmatprep.subr.mxu0 0.0
          %337 = vmatpush1.msra.mxu0 0.0
          %338 = vmatprep.subr.mxu0 0.0
          %339 = vmatpush1.msra.mxu0 0.0
          %340 = vmatprep.subr.mxu0 0.0
          %341 = vmatpush1.msra.mxu0 0.0
          %342 = vmatprep.subr.mxu0 0.0
          %343 = vmatpush1.msra.mxu0 0.0
          %344 = vmatprep.mubr.f32.mxu0 0.0
          %345 = vmatmul.mubr.f32.gmra.mrb[0].mxu0 %v278
          %v346 = vpop.f32.mrb[0].mxu0
          %v347 = vadd.f32 0.0, %v346
          %v348 = vpop.f32.mrb[0].mxu0
          %349 = vdwg.mxu0
          %350 = vst [vmem:[#allocation2] sm:$0xff] %v347
          %v351 = vld [vmem:[%s3] sm:$0xff]
          %v352 = vld [vmem:[%s3 + $0x8] sm:$0xff]
          %v353 = vld [vmem:[%s3 + $0x10] sm:$0xff]
          %v354 = vld [vmem:[%s3 + $0x18] sm:$0xff]
          %v355 = vld [vmem:[%s3 + $0x20] sm:$0xff]
          %v356 = vld [vmem:[%s3 + $0x28] sm:$0xff]
          %v357 = vld [vmem:[%s3 + $0x30] sm:$0xff]
          %v358 = vld [vmem:[%s3 + $0x38] sm:$0xff]
          %v359 = vld [vmem:[%s266] sm:$0xff]
          %v360 = vld [vmem:[%s266 + $0x8] sm:$0xff]
          %v361 = vld [vmem:[%s266 + $0x10] sm:$0xff]
          %v362 = vld [vmem:[%s266 + $0x18] sm:$0xff]
          %v364 = vsel %vm276, %v351, 0
          %v367 = vsel %vm276, %v352, 0
          %v370 = vsel %vm276, %v353, 0
          %v373 = vsel %vm276, %v354, 0
          %v376 = vsel %vm276, %v355, 0
          %v379 = vsel %vm276, %v356, 0
          %v382 = vsel %vm276, %v357, 0
          %v385 = vsel %vm276, %v358, 0
          %387 = vmatprep.subr.mxu0 0.0
          %388 = vmatpush1.msra.mxu0 %v359
          %389 = vmatprep.subr.mxu0 0.0
          %390 = vmatpush1.msra.mxu0 %v360
          %391 = vmatprep.subr.mxu0 0.0
          %392 = vmatpush1.msra.mxu0 %v361
          %393 = vmatprep.subr.mxu0 0.0
          %394 = vmatpush1.msra.mxu0 %v362
          %395 = vmatprep.subr.mxu0 0.0
          %396 = vmatpush1.msra.mxu0 0.0
          %397 = vmatprep.subr.mxu0 0.0
          %398 = vmatpush1.msra.mxu0 0.0
          %399 = vmatprep.subr.mxu0 0.0
          %400 = vmatpush1.msra.mxu0 0.0
          %401 = vmatprep.subr.mxu0 0.0
          %402 = vmatpush1.msra.mxu0 0.0
          %403 = vmatprep.subr.mxu0 0.0
          %404 = vmatpush1.msra.mxu0 0.0
          %405 = vmatprep.subr.mxu0 0.0
          %406 = vmatpush1.msra.mxu0 0.0
          %407 = vmatprep.subr.mxu0 0.0
          %408 = vmatpush1.msra.mxu0 0.0
          %409 = vmatprep.subr.mxu0 0.0
          %410 = vmatpush1.msra.mxu0 0.0
          %411 = vmatprep.subr.mxu0 0.0
          %412 = vmatpush1.msra.mxu0 0.0
          %413 = vmatprep.subr.mxu0 0.0
          %414 = vmatpush1.msra.mxu0 0.0
          %415 = vmatprep.subr.mxu0 0.0
          %416 = vmatpush1.msra.mxu0 0.0
          %417 = vmatprep.subr.mxu0 0.0
          %418 = vmatpush1.msra.mxu0 0.0
          %419 = vmatprep.subr.mxu0 0.0
          %420 = vmatpush1.msra.mxu0 0.0
          %421 = vmatprep.subr.mxu0 0.0
          %422 = vmatpush1.msra.mxu0 0.0
          %423 = vmatprep.subr.mxu0 0.0
          %424 = vmatpush1.msra.mxu0 0.0
          %425 = vmatprep.subr.mxu0 0.0
          %426 = vmatpush1.msra.mxu0 0.0
          %427 = vmatprep.subr.mxu0 0.0
          %428 = vmatpush1.msra.mxu0 0.0
          %429 = vmatprep.subr.mxu0 0.0
          %430 = vmatpush1.msra.mxu0 0.0
          %431 = vmatprep.subr.mxu0 0.0
          %432 = vmatpush1.msra.mxu0 0.0
          %433 = vmatprep.subr.mxu0 0.0
          %434 = vmatpush1.msra.mxu0 0.0
          %435 = vmatprep.subr.mxu0 0.0
          %436 = vmatpush1.msra.mxu0 0.0
          %437 = vmatprep.subr.mxu0 0.0
          %438 = vmatpush1.msra.mxu0 0.0
          %439 = vmatprep.subr.mxu0 0.0
          %440 = vmatpush1.msra.mxu0 0.0
          %441 = vmatprep.subr.mxu0 0.0
          %442 = vmatpush1.msra.mxu0 0.0
          %443 = vmatprep.subr.mxu0 0.0
          %444 = vmatpush1.msra.mxu0 0.0
          %445 = vmatprep.subr.mxu0 0.0
          %446 = vmatpush1.msra.mxu0 0.0
          %447 = vmatprep.subr.mxu0 0.0
          %448 = vmatpush1.msra.mxu0 0.0
          %449 = vmatprep.subr.mxu0 0.0
          %450 = vmatpush1.msra.mxu0 0.0
          %451 = vmatprep.mubr.f32.mxu0 0.0
          %452 = vmatmul.mubr.f32.gmra.mrb[0].mxu0 %v364
          %v453 = vpop.f32.mrb[0].mxu0
          %v454 = vadd.f32 0.0, %v453
          %v455 = vpop.f32.mrb[0].mxu0
          %456 = vmatprep.mubr.f32.mxu0 0.0
          %457 = vmatmul.mubr.f32.gmra.mrb[0].mxu0 %v367
          %v458 = vpop.f32.mrb[0].mxu0
          %v459 = vadd.f32 0.0, %v458
          %v460 = vpop.f32.mrb[0].mxu0
          %461 = vmatprep.mubr.f32.mxu0 0.0
          %462 = vmatmul.mubr.f32.gmra.mrb[0].mxu0 %v370
          %v463 = vpop.f32.mrb[0].mxu0
          %v464 = vadd.f32 0.0, %v463
          %v465 = vpop.f32.mrb[0].mxu0
          %466 = vmatprep.mubr.f32.mxu0 0.0
          %467 = vmatmul.mubr.f32.gmra.mrb[0].mxu0 %v373
          %v468 = vpop.f32.mrb[0].mxu0
          %v469 = vadd.f32 0.0, %v468
          %v470 = vpop.f32.mrb[0].mxu0
          %471 = vmatprep.mubr.f32.mxu0 0.0
          %472 = vmatmul.mubr.f32.gmra.mrb[0].mxu0 %v376
          %v473 = vpop.f32.mrb[0].mxu0
          %v474 = vadd.f32 0.0, %v473
          %v475 = vpop.f32.mrb[0].mxu0
          %476 = vmatprep.mubr.f32.mxu0 0.0
          %477 = vmatmul.mubr.f32.gmra.mrb[0].mxu0 %v379
          %v478 = vpop.f32.mrb[0].mxu0
          %v479 = vadd.f32 0.0, %v478
          %v480 = vpop.f32.mrb[0].mxu0
          %481 = vmatprep.mubr.f32.mxu0 0.0
          %482 = vmatmul.mubr.f32.gmra.mrb[0].mxu0 %v382
          %v483 = vpop.f32.mrb[0].mxu0
          %v484 = vadd.f32 0.0, %v483
          %v485 = vpop.f32.mrb[0].mxu0
          %486 = vmatprep.mubr.f32.mxu0 0.0
          %487 = vmatmul.mubr.f32.gmra.mrb[0].mxu0 %v385
          %v488 = vpop.f32.mrb[0].mxu0
          %v489 = vadd.f32 0.0, %v488
          %v490 = vpop.f32.mrb[0].mxu0
          %491 = vdwg.mxu0
          %vm492 = vcmask 64512
          %493 = vst.msk [vmem:[#allocation3] sm:$0xff] %vm492, %v454
          %494 = vst.msk [vmem:[#allocation3 + $0x8] sm:$0xff] %vm492, %v459
          %495 = vst.msk [vmem:[#allocation3 + $0x10] sm:$0xff] %vm492, %v464
          %496 = vst.msk [vmem:[#allocation3 + $0x18] sm:$0xff] %vm492, %v469
          %497 = vst.msk [vmem:[#allocation3 + $0x20] sm:$0xff] %vm492, %v474
          %498 = vst.msk [vmem:[#allocation3 + $0x28] sm:$0xff] %vm492, %v479
          %499 = vst.msk [vmem:[#allocation3 + $0x30] sm:$0xff] %vm492, %v484
          %500 = vst.msk [vmem:[#allocation3 + $0x38] sm:$0xff] %vm492, %v489
        $region40: #{tpu_custom_call.1} parent=35 // pred_fallthru
          _
        %s501 = smul.u32 %s28, 8
        %s502 = scalar_lea.vmem [#allocation2], %s501
        %v503 = vld [vmem:[%s502] sm:$0xff]
        %v504 = vld [vmem:[#allocation3] sm:$0xff]
        %v505 = vld [vmem:[#allocation3 + $0x8] sm:$0xff]
        %v506 = vld [vmem:[#allocation3 + $0x10] sm:$0xff]
        %v507 = vld [vmem:[#allocation3 + $0x18] sm:$0xff]
        %v508 = vld [vmem:[#allocation2] sm:$0xff]
        %vm509 = vcmask 261120
        %v511 = vsel %vm509, %v503, 0
        %513 = vmatprep.subr.mxu0 0.0
        %514 = vmatpush1.msra.mxu0 %v504
        %515 = vmatprep.subr.mxu0 0.0
        %516 = vmatpush1.msra.mxu0 %v505
        %517 = vmatprep.subr.mxu0 0.0
        %518 = vmatpush1.msra.mxu0 %v506
        %519 = vmatprep.subr.mxu0 0.0
        %520 = vmatpush1.msra.mxu0 %v507
        %521 = vmatprep.subr.mxu0 0.0
        %522 = vmatpush1.msra.mxu0 0.0
        %523 = vmatprep.subr.mxu0 0.0
        %524 = vmatpush1.msra.mxu0 0.0
        %525 = vmatprep.subr.mxu0 0.0
        %526 = vmatpush1.msra.mxu0 0.0
        %527 = vmatprep.subr.mxu0 0.0
        %528 = vmatpush1.msra.mxu0 0.0
        %529 = vmatprep.subr.mxu0 0.0
        %530 = vmatpush1.msra.mxu0 0.0
        %531 = vmatprep.subr.mxu0 0.0
        %532 = vmatpush1.msra.mxu0 0.0
        %533 = vmatprep.subr.mxu0 0.0
        %534 = vmatpush1.msra.mxu0 0.0
        %535 = vmatprep.subr.mxu0 0.0
        %536 = vmatpush1.msra.mxu0 0.0
        %537 = vmatprep.subr.mxu0 0.0
        %538 = vmatpush1.msra.mxu0 0.0
        %539 = vmatprep.subr.mxu0 0.0
        %540 = vmatpush1.msra.mxu0 0.0
        %541 = vmatprep.subr.mxu0 0.0
        %542 = vmatpush1.msra.mxu0 0.0
        %543 = vmatprep.subr.mxu0 0.0
        %544 = vmatpush1.msra.mxu0 0.0
        %545 = vmatprep.subr.mxu0 0.0
        %546 = vmatpush1.msra.mxu0 0.0
        %547 = vmatprep.subr.mxu0 0.0
        %548 = vmatpush1.msra.mxu0 0.0
        %549 = vmatprep.subr.mxu0 0.0
        %550 = vmatpush1.msra.mxu0 0.0
        %551 = vmatprep.subr.mxu0 0.0
        %552 = vmatpush1.msra.mxu0 0.0
        %553 = vmatprep.subr.mxu0 0.0
        %554 = vmatpush1.msra.mxu0 0.0
        %555 = vmatprep.subr.mxu0 0.0
        %556 = vmatpush1.msra.mxu0 0.0
        %557 = vmatprep.subr.mxu0 0.0
        %558 = vmatpush1.msra.mxu0 0.0
        %559 = vmatprep.subr.mxu0 0.0
        %560 = vmatpush1.msra.mxu0 0.0
        %561 = vmatprep.subr.mxu0 0.0
        %562 = vmatpush1.msra.mxu0 0.0
        %563 = vmatprep.subr.mxu0 0.0
        %564 = vmatpush1.msra.mxu0 0.0
        %565 = vmatprep.subr.mxu0 0.0
        %566 = vmatpush1.msra.mxu0 0.0
        %567 = vmatprep.subr.mxu0 0.0
        %568 = vmatpush1.msra.mxu0 0.0
        %569 = vmatprep.subr.mxu0 0.0
        %570 = vmatpush1.msra.mxu0 0.0
        %571 = vmatprep.subr.mxu0 0.0
        %572 = vmatpush1.msra.mxu0 0.0
        %573 = vmatprep.subr.mxu0 0.0
        %574 = vmatpush1.msra.mxu0 0.0
        %575 = vmatprep.subr.mxu0 0.0
        %576 = vmatpush1.msra.mxu0 0.0
        %577 = vmatprep.mubr.f32.mxu0 0.0
        %578 = vmatmul.mubr.f32.gmra.mrb[0].mxu0 %v511
        %v579 = vpop.f32.mrb[0].mxu0
        %v580 = vadd.f32 0.0, %v579
        %v581 = vpop.f32.mrb[0].mxu0
        %582 = vdwg.mxu0
        %v583 = vmul.f32 %v580, 0.125
        %v585 = vcombine.high %v583, %v583
        %v587 = vunpack.c.l.s4 1966171168
        %v588 = vunpack.c.0.s8 %v587
        %v589 = vlaneseq
        %v590 = vshrl.u32 %v589, 7
        %v591 = vsub.s32 %v588, %v590
        %v592 = vrot.slane %v583, %v591
        %v594 = vunpack.c.l.s4 1966171168
        %v595 = vunpack.c.0.s8 %v594
        %v596 = vlaneseq
        %v597 = vshrl.u32 %v596, 7
        %v598 = vsub.s32 %v595, %v597
        %v599 = vrot.slane %v585, %v598
        %v600 = vcombine.high %v592, %v592
        %v601 = vcombine.high %v599, %v599
        %v603 = vunpack.c.l.s4 1966171168
        %v604 = vunpack.c.0.s8 %v603
        %v605 = vlaneseq
        %v606 = vshrl.u32 %v605, 7
        %v607 = vsub.s32 %v604, %v606
        %v608 = vrot.slane %v592, %v607
        %v610 = vunpack.c.l.s4 1966171168
        %v611 = vunpack.c.0.s8 %v610
        %v612 = vlaneseq
        %v613 = vshrl.u32 %v612, 7
        %v614 = vsub.s32 %v611, %v613
        %v615 = vrot.slane %v599, %v614
        %v617 = vunpack.c.l.s4 1966171168
        %v618 = vunpack.c.0.s8 %v617
        %v619 = vlaneseq
        %v620 = vshrl.u32 %v619, 7
        %v621 = vsub.s32 %v618, %v620
        %v622 = vrot.slane %v600, %v621
        %v624 = vunpack.c.l.s4 1966171168
        %v625 = vunpack.c.0.s8 %v624
        %v626 = vlaneseq
        %v627 = vshrl.u32 %v626, 7
        %v628 = vsub.s32 %v625, %v627
        %v629 = vrot.slane %v601, %v628
        %v630 = vcombine.high %v608, %v608
        %v631 = vcombine.high %v615, %v615
        %v632 = vcombine.high %v622, %v622
        %v633 = vcombine.high %v629, %v629
        %v634 = vlaneseq
        %v635 = vshrl.u32 %v634, 7
        %v636 = vsub.s32 0, %v635
        %v637 = vrot.slane %v583, %v636
        %639 = vbcast.lane.b32.xlu0 %v637, 256
        %v640 = vpop.permute.xlu0 %639
        %v641 = vlaneseq
        %v642 = vshrl.u32 %v641, 7
        %v643 = vsub.s32 1, %v642
        %v644 = vrot.slane %v583, %v643
        %646 = vbcast.lane.b32.xlu0 %v644, 256
        %v647 = vpop.permute.xlu0 %646
        %v648 = vlaneseq
        %v649 = vshrl.u32 %v648, 7
        %v650 = vsub.s32 2, %v649
        %v651 = vrot.slane %v583, %v650
        %653 = vbcast.lane.b32.xlu0 %v651, 256
        %v654 = vpop.permute.xlu0 %653
        %v655 = vlaneseq
        %v656 = vshrl.u32 %v655, 7
        %v657 = vsub.s32 3, %v656
        %v658 = vrot.slane %v583, %v657
        %660 = vbcast.lane.b32.xlu0 %v658, 256
        %v661 = vpop.permute.xlu0 %660
        %v662 = vlaneseq
        %v663 = vshrl.u32 %v662, 7
        %v664 = vsub.s32 4, %v663
        %v665 = vrot.slane %v583, %v664
        %667 = vbcast.lane.b32.xlu0 %v665, 256
        %v668 = vpop.permute.xlu0 %667
        %v669 = vlaneseq
        %v670 = vshrl.u32 %v669, 7
        %v671 = vsub.s32 5, %v670
        %v672 = vrot.slane %v583, %v671
        %674 = vbcast.lane.b32.xlu0 %v672, 256
        %v675 = vpop.permute.xlu0 %674
        %v676 = vlaneseq
        %v677 = vshrl.u32 %v676, 7
        %v678 = vsub.s32 6, %v677
        %v679 = vrot.slane %v583, %v678
        %681 = vbcast.lane.b32.xlu0 %v679, 256
        %v682 = vpop.permute.xlu0 %681
        %v683 = vlaneseq
        %v684 = vshrl.u32 %v683, 7
        %v685 = vsub.s32 7, %v684
        %v686 = vrot.slane %v583, %v685
        %688 = vbcast.lane.b32.xlu0 %v686, 256
        %v689 = vpop.permute.xlu0 %688
        %v690 = vlaneseq
        %v691 = vshrl.u32 %v690, 7
        %v692 = vsub.s32 0, %v691
        %v693 = vrot.slane %v608, %v692
        %v694 = vlaneseq
        %v695 = vshrl.u32 %v694, 7
        %v696 = vsub.s32 0, %v695
        %v697 = vrot.slane %v622, %v696
        %v698 = vlaneseq
        %v699 = vshrl.u32 %v698, 7
        %v700 = vsub.s32 0, %v699
        %v701 = vrot.slane %v630, %v700
        %v702 = vlaneseq
        %v703 = vshrl.u32 %v702, 7
        %v704 = vsub.s32 0, %v703
        %v705 = vrot.slane %v632, %v704
        %v706 = vlaneseq
        %v707 = vshrl.u32 %v706, 7
        %v708 = vsub.s32 0, %v707
        %v709 = vrot.slane %v615, %v708
        %v710 = vlaneseq
        %v711 = vshrl.u32 %v710, 7
        %v712 = vsub.s32 0, %v711
        %v713 = vrot.slane %v629, %v712
        %v714 = vlaneseq
        %v715 = vshrl.u32 %v714, 7
        %v716 = vsub.s32 0, %v715
        %v717 = vrot.slane %v631, %v716
        %v718 = vlaneseq
        %v719 = vshrl.u32 %v718, 7
        %v720 = vsub.s32 0, %v719
        %v721 = vrot.slane %v633, %v720
        %vm730 = vcmp.ge.f32.partialorder %v693, %v640
        %vm731 = vcmp.ge.f32.partialorder %v697, %v647
        %vm732 = vcmp.ge.f32.partialorder %v701, %v654
        %vm733 = vcmp.ge.f32.partialorder %v705, %v661
        %vm734 = vcmp.ge.f32.partialorder %v709, %v668
        %vm735 = vcmp.ge.f32.partialorder %v713, %v675
        %vm736 = vcmp.ge.f32.partialorder %v717, %v682
        %vm737 = vcmp.ge.f32.partialorder %v721, %v689
        %v738 = vsel %vm730, 1, 0
        %v739 = vsel %vm731, 1, 0
        %v740 = vsel %vm732, 1, 0
        %v741 = vsel %vm733, 1, 0
        %v742 = vsel %vm734, 1, 0
        %v743 = vsel %vm735, 1, 0
        %v744 = vsel %vm736, 1, 0
        %v745 = vsel %vm737, 1, 0
        %v746 = vcvt.s32.f32 %v738
        %v747 = vcvt.s32.f32 %v739
        %v748 = vcvt.s32.f32 %v740
        %v749 = vcvt.s32.f32 %v741
        %v750 = vcvt.s32.f32 %v742
        %v751 = vcvt.s32.f32 %v743
        %v752 = vcvt.s32.f32 %v744
        %v753 = vcvt.s32.f32 %v745
        %vm754 = vcmask 64512
        %v755 = vsel %vm754, %v746, 0.0
        %756 = vadd.xlane.f32.xlu0 %v755
        %v757 = vpop.xlane.xlu0 %756
        %v758 = vsel %vm754, %v747, 0.0
        %759 = vadd.xlane.f32.xlu0 %v758
        %v760 = vpop.xlane.xlu0 %759
        %v761 = vsel %vm754, %v748, 0.0
        %762 = vadd.xlane.f32.xlu0 %v761
        %v763 = vpop.xlane.xlu0 %762
        %v764 = vsel %vm754, %v749, 0.0
        %765 = vadd.xlane.f32.xlu0 %v764
        %v766 = vpop.xlane.xlu0 %765
        %v767 = vsel %vm754, %v750, 0.0
        %768 = vadd.xlane.f32.xlu0 %v767
        %v769 = vpop.xlane.xlu0 %768
        %v770 = vsel %vm754, %v751, 0.0
        %771 = vadd.xlane.f32.xlu0 %v770
        %v772 = vpop.xlane.xlu0 %771
        %v773 = vsel %vm754, %v752, 0.0
        %774 = vadd.xlane.f32.xlu0 %v773
        %v775 = vpop.xlane.xlu0 %774
        %v776 = vsel %vm754, %v753, 0.0
        %777 = vadd.xlane.f32.xlu0 %v776
        %v778 = vpop.xlane.xlu0 %777
        %v779 = vmul.f32 %v746, %v693
        %v780 = vmul.f32 %v747, %v697
        %v781 = vmul.f32 %v748, %v701
        %v782 = vmul.f32 %v749, %v705
        %v783 = vmul.f32 %v750, %v709
        %v784 = vmul.f32 %v751, %v713
        %v785 = vmul.f32 %v752, %v717
        %v786 = vmul.f32 %v753, %v721
        %v787 = vsel %vm754, %v779, 0.0
        %788 = vadd.xlane.f32.xlu0 %v787
        %v789 = vpop.xlane.xlu0 %788
        %v790 = vsel %vm754, %v780, 0.0
        %791 = vadd.xlane.f32.xlu0 %v790
        %v792 = vpop.xlane.xlu0 %791
        %v793 = vsel %vm754, %v781, 0.0
        %794 = vadd.xlane.f32.xlu0 %v793
        %v795 = vpop.xlane.xlu0 %794
        %v796 = vsel %vm754, %v782, 0.0
        %797 = vadd.xlane.f32.xlu0 %v796
        %v798 = vpop.xlane.xlu0 %797
        %v799 = vsel %vm754, %v783, 0.0
        %800 = vadd.xlane.f32.xlu0 %v799
        %v801 = vpop.xlane.xlu0 %800
        %v802 = vsel %vm754, %v784, 0.0
        %803 = vadd.xlane.f32.xlu0 %v802
        %v804 = vpop.xlane.xlu0 %803
        %v805 = vsel %vm754, %v785, 0.0
        %806 = vadd.xlane.f32.xlu0 %v805
        %v807 = vpop.xlane.xlu0 %806
        %v808 = vsel %vm754, %v786, 0.0
        %809 = vadd.xlane.f32.xlu0 %v808
        %v810 = vpop.xlane.xlu0 %809
        %v811 = vlaneseq
        %v812 = vshrl.u32 %v811, 7
        %v813 = vsub.s32 0, %v812
        %v814 = vrot.slane %v583, %v813
        %816 = vbcast.lane.b32.xlu0 %v814, 256
        %v817 = vpop.permute.xlu0 %816
        %v818 = vlaneseq
        %v819 = vshrl.u32 %v818, 7
        %v820 = vsub.s32 1, %v819
        %v821 = vrot.slane %v583, %v820
        %823 = vbcast.lane.b32.xlu0 %v821, 256
        %v824 = vpop.permute.xlu0 %823
        %v825 = vlaneseq
        %v826 = vshrl.u32 %v825, 7
        %v827 = vsub.s32 2, %v826
        %v828 = vrot.slane %v583, %v827
        %830 = vbcast.lane.b32.xlu0 %v828, 256
        %v831 = vpop.permute.xlu0 %830
        %v832 = vlaneseq
        %v833 = vshrl.u32 %v832, 7
        %v834 = vsub.s32 3, %v833
        %v835 = vrot.slane %v583, %v834
        %837 = vbcast.lane.b32.xlu0 %v835, 256
        %v838 = vpop.permute.xlu0 %837
        %v839 = vlaneseq
        %v840 = vshrl.u32 %v839, 7
        %v841 = vsub.s32 4, %v840
        %v842 = vrot.slane %v583, %v841
        %844 = vbcast.lane.b32.xlu0 %v842, 256
        %v845 = vpop.permute.xlu0 %844
        %v846 = vlaneseq
        %v847 = vshrl.u32 %v846, 7
        %v848 = vsub.s32 5, %v847
        %v849 = vrot.slane %v583, %v848
        %851 = vbcast.lane.b32.xlu0 %v849, 256
        %v852 = vpop.permute.xlu0 %851
        %v853 = vlaneseq
        %v854 = vshrl.u32 %v853, 7
        %v855 = vsub.s32 6, %v854
        %v856 = vrot.slane %v583, %v855
        %858 = vbcast.lane.b32.xlu0 %v856, 256
        %v859 = vpop.permute.xlu0 %858
        %v860 = vlaneseq
        %v861 = vshrl.u32 %v860, 7
        %v862 = vsub.s32 7, %v861
        %v863 = vrot.slane %v583, %v862
        %865 = vbcast.lane.b32.xlu0 %v863, 256
        %v866 = vpop.permute.xlu0 %865
        %v875 = vmul.f32 %v757, %v817
        %v876 = vmul.f32 %v760, %v824
        %v877 = vmul.f32 %v763, %v831
        %v878 = vmul.f32 %v766, %v838
        %v879 = vmul.f32 %v769, %v845
        %v880 = vmul.f32 %v772, %v852
        %v881 = vmul.f32 %v775, %v859
        %v882 = vmul.f32 %v778, %v866
        %v883 = vadd.f32 %v875, 1.0
        %v884 = vadd.f32 %v876, 1.0
        %v885 = vadd.f32 %v877, 1.0
        %v886 = vadd.f32 %v878, 1.0
        %v887 = vadd.f32 %v879, 1.0
        %v888 = vadd.f32 %v880, 1.0
        %v889 = vadd.f32 %v881, 1.0
        %v890 = vadd.f32 %v882, 1.0
        %vm891 = vcmp.gt.f32.partialorder %v883, %v789
        %vm892 = vcmp.gt.f32.partialorder %v884, %v792
        %vm893 = vcmp.gt.f32.partialorder %v885, %v795
        %vm894 = vcmp.gt.f32.partialorder %v886, %v798
        %vm895 = vcmp.gt.f32.partialorder %v887, %v801
        %vm896 = vcmp.gt.f32.partialorder %v888, %v804
        %vm897 = vcmp.gt.f32.partialorder %v889, %v807
        %vm898 = vcmp.gt.f32.partialorder %v890, %v810
        %v899 = vsel %vm891, 1, 0
        %v900 = vsel %vm892, 1, 0
        %v901 = vsel %vm893, 1, 0
        %v902 = vsel %vm894, 1, 0
        %v903 = vsel %vm895, 1, 0
        %v904 = vsel %vm896, 1, 0
        %v905 = vsel %vm897, 1, 0
        %v906 = vsel %vm898, 1, 0
        %v907 = vcvt.s32.f32 %v899
        %v908 = vcvt.s32.f32 %v900
        %v909 = vcvt.s32.f32 %v901
        %v910 = vcvt.s32.f32 %v902
        %v911 = vcvt.s32.f32 %v903
        %v912 = vcvt.s32.f32 %v904
        %v913 = vcvt.s32.f32 %v905
        %v914 = vcvt.s32.f32 %v906
        %923 = vset.pattern.permute.xlu0 0
        %924 = vperm.xlu0 %923, %v907
        %v925 = vpop.permute.xlu0 %924
        %926 = vset.pattern.permute.xlu0 0
        %927 = vperm.xlu0 %926, %v908
        %v928 = vpop.permute.xlu0 %927
        %929 = vset.pattern.permute.xlu0 0
        %930 = vperm.xlu0 %929, %v909
        %v931 = vpop.permute.xlu0 %930
        %932 = vset.pattern.permute.xlu0 0
        %933 = vperm.xlu0 %932, %v910
        %v934 = vpop.permute.xlu0 %933
        %935 = vset.pattern.permute.xlu0 0
        %936 = vperm.xlu0 %935, %v911
        %v937 = vpop.permute.xlu0 %936
        %938 = vset.pattern.permute.xlu0 0
        %939 = vperm.xlu0 %938, %v912
        %v940 = vpop.permute.xlu0 %939
        %941 = vset.pattern.permute.xlu0 0
        %942 = vperm.xlu0 %941, %v913
        %v943 = vpop.permute.xlu0 %942
        %944 = vset.pattern.permute.xlu0 0
        %945 = vperm.xlu0 %944, %v914
        %v946 = vpop.permute.xlu0 %945
        %v947 = vlaneseq
        %v948 = vand.u32 %v947, 127
        %v949 = vlaneseq
        %v950 = vshrl.u32 %v949, 7
        %v951 = vsub.s32 %v948, %v950
        %v952 = vrot.slane %v925, %v951
        %v953 = vlaneseq
        %v954 = vshrl.u32 %v953, 7
        %v955 = vsub.s32 %v948, %v954
        %v956 = vrot.slane %v928, %v955
        %v957 = vlaneseq
        %v958 = vshrl.u32 %v957, 7
        %v959 = vsub.s32 %v948, %v958
        %v960 = vrot.slane %v931, %v959
        %v961 = vlaneseq
        %v962 = vshrl.u32 %v961, 7
        %v963 = vsub.s32 %v948, %v962
        %v964 = vrot.slane %v934, %v963
        %v965 = vlaneseq
        %v966 = vshrl.u32 %v965, 7
        %v967 = vsub.s32 %v948, %v966
        %v968 = vrot.slane %v937, %v967
        %v969 = vlaneseq
        %v970 = vshrl.u32 %v969, 7
        %v971 = vsub.s32 %v948, %v970
        %v972 = vrot.slane %v940, %v971
        %v973 = vlaneseq
        %v974 = vshrl.u32 %v973, 7
        %v975 = vsub.s32 %v948, %v974
        %v976 = vrot.slane %v943, %v975
        %v977 = vlaneseq
        %v978 = vshrl.u32 %v977, 7
        %v979 = vsub.s32 %v948, %v978
        %v980 = vrot.slane %v946, %v979
        %vm981 = vcmask 1041409
        %v982 = vsel %vm981, %v956, %v952
        %vm983 = vcmask 1042434
        %v984 = vsel %vm983, %v960, %v982
        %vm985 = vcmask 1043459
        %v986 = vsel %vm985, %v964, %v984
        %vm987 = vcmask 1044484
        %v988 = vsel %vm987, %v968, %v986
        %vm989 = vcmask 1045509
        %v990 = vsel %vm989, %v972, %v988
        %vm991 = vcmask 1046534
        %v992 = vsel %vm991, %v976, %v990
        %vm993 = vcmask 1047559
        %v994 = vsel %vm993, %v980, %v992
        %v996 = vsel %vm754, %v994, 0.0
        %997 = vadd.xlane.f32.xlu0 %v996
        %v998 = vpop.xlane.xlu0 %997
        %v999 = vmul.f32 %v907, %v817
        %v1000 = vmul.f32 %v908, %v824
        %v1001 = vmul.f32 %v909, %v831
        %v1002 = vmul.f32 %v910, %v838
        %v1003 = vmul.f32 %v911, %v845
        %v1004 = vmul.f32 %v912, %v852
        %v1005 = vmul.f32 %v913, %v859
        %v1006 = vmul.f32 %v914, %v866
        %1015 = vset.pattern.permute.xlu0 0
        %1016 = vperm.xlu0 %1015, %v999
        %v1017 = vpop.permute.xlu0 %1016
        %1018 = vset.pattern.permute.xlu0 0
        %1019 = vperm.xlu0 %1018, %v1000
        %v1020 = vpop.permute.xlu0 %1019
        %1021 = vset.pattern.permute.xlu0 0
        %1022 = vperm.xlu0 %1021, %v1001
        %v1023 = vpop.permute.xlu0 %1022
        %1024 = vset.pattern.permute.xlu0 0
        %1025 = vperm.xlu0 %1024, %v1002
        %v1026 = vpop.permute.xlu0 %1025
        %1027 = vset.pattern.permute.xlu0 0
        %1028 = vperm.xlu0 %1027, %v1003
        %v1029 = vpop.permute.xlu0 %1028
        %1030 = vset.pattern.permute.xlu0 0
        %1031 = vperm.xlu0 %1030, %v1004
        %v1032 = vpop.permute.xlu0 %1031
        %1033 = vset.pattern.permute.xlu0 0
        %1034 = vperm.xlu0 %1033, %v1005
        %v1035 = vpop.permute.xlu0 %1034
        %1036 = vset.pattern.permute.xlu0 0
        %1037 = vperm.xlu0 %1036, %v1006
        %v1038 = vpop.permute.xlu0 %1037
        %v1039 = vlaneseq
        %v1040 = vshrl.u32 %v1039, 7
        %v1041 = vsub.s32 %v948, %v1040
        %v1042 = vrot.slane %v1017, %v1041
        %v1043 = vlaneseq
        %v1044 = vshrl.u32 %v1043, 7
        %v1045 = vsub.s32 %v948, %v1044
        %v1046 = vrot.slane %v1020, %v1045
        %v1047 = vlaneseq
        %v1048 = vshrl.u32 %v1047, 7
        %v1049 = vsub.s32 %v948, %v1048
        %v1050 = vrot.slane %v1023, %v1049
        %v1051 = vlaneseq
        %v1052 = vshrl.u32 %v1051, 7
        %v1053 = vsub.s32 %v948, %v1052
        %v1054 = vrot.slane %v1026, %v1053
        %v1055 = vlaneseq
        %v1056 = vshrl.u32 %v1055, 7
        %v1057 = vsub.s32 %v948, %v1056
        %v1058 = vrot.slane %v1029, %v1057
        %v1059 = vlaneseq
        %v1060 = vshrl.u32 %v1059, 7
        %v1061 = vsub.s32 %v948, %v1060
        %v1062 = vrot.slane %v1032, %v1061
        %v1063 = vlaneseq
        %v1064 = vshrl.u32 %v1063, 7
        %v1065 = vsub.s32 %v948, %v1064
        %v1066 = vrot.slane %v1035, %v1065
        %v1067 = vlaneseq
        %v1068 = vshrl.u32 %v1067, 7
        %v1069 = vsub.s32 %v948, %v1068
        %v1070 = vrot.slane %v1038, %v1069
        %v1071 = vsel %vm981, %v1046, %v1042
        %v1072 = vsel %vm983, %v1050, %v1071
        %v1073 = vsel %vm985, %v1054, %v1072
        %v1074 = vsel %vm987, %v1058, %v1073
        %v1075 = vsel %vm989, %v1062, %v1074
        %v1076 = vsel %vm991, %v1066, %v1075
        %v1077 = vsel %vm993, %v1070, %v1076
        %v1079 = vsel %vm754, %v1077, 0.0
        %1080 = vadd.xlane.f32.xlu0 %v1079
        %v1081 = vpop.xlane.xlu0 %1080
        %v1082 = vsub.f32 %v1081, 1.0
        %v1083 = vrcp.pop %v998
        %v1084 = vmul.f32 %v1082, %v1083
        %v1085 = vsub.f32 %v583, %v1084
        %v1086 = vmax.f32 %v1085, 0.0
        %1087 = vst.msk [vmem:[%s257] sm:$0xff] %vm754, %v1086
        %v1088 = vld [vmem:[%s502] sm:$0xff]
        %v1089 = vld [vmem:[#allocation3 + $0x20] sm:$0xff]
        %v1090 = vld [vmem:[#allocation3 + $0x28] sm:$0xff]
        %v1091 = vld [vmem:[#allocation3 + $0x30] sm:$0xff]
        %v1092 = vld [vmem:[#allocation3 + $0x38] sm:$0xff]
        %v1093 = vld [vmem:[#allocation2] sm:$0xff]
        %1095 = vrot.lane.b32.xlu0 %v1088, 96
        %v1096 = vpop.permute.xlu0 %1095
        %v1097 = vsel %vm509, %v1096, 0
        %1099 = vmatprep.subr.mxu0 0.0
        %1100 = vmatpush1.msra.mxu0 %v1089
        %1101 = vmatprep.subr.mxu0 0.0
        %1102 = vmatpush1.msra.mxu0 %v1090
        %1103 = vmatprep.subr.mxu0 0.0
        %1104 = vmatpush1.msra.mxu0 %v1091
        %1105 = vmatprep.subr.mxu0 0.0
        %1106 = vmatpush1.msra.mxu0 %v1092
        %1107 = vmatprep.subr.mxu0 0.0
        %1108 = vmatpush1.msra.mxu0 0.0
        %1109 = vmatprep.subr.mxu0 0.0
        %1110 = vmatpush1.msra.mxu0 0.0
        %1111 = vmatprep.subr.mxu0 0.0
        %1112 = vmatpush1.msra.mxu0 0.0
        %1113 = vmatprep.subr.mxu0 0.0
        %1114 = vmatpush1.msra.mxu0 0.0
        %1115 = vmatprep.subr.mxu0 0.0
        %1116 = vmatpush1.msra.mxu0 0.0
        %1117 = vmatprep.subr.mxu0 0.0
        %1118 = vmatpush1.msra.mxu0 0.0
        %1119 = vmatprep.subr.mxu0 0.0
        %1120 = vmatpush1.msra.mxu0 0.0
        %1121 = vmatprep.subr.mxu0 0.0
        %1122 = vmatpush1.msra.mxu0 0.0
        %1123 = vmatprep.subr.mxu0 0.0
        %1124 = vmatpush1.msra.mxu0 0.0
        %1125 = vmatprep.subr.mxu0 0.0
        %1126 = vmatpush1.msra.mxu0 0.0
        %1127 = vmatprep.subr.mxu0 0.0
        %1128 = vmatpush1.msra.mxu0 0.0
        %1129 = vmatprep.subr.mxu0 0.0
        %1130 = vmatpush1.msra.mxu0 0.0
        %1131 = vmatprep.subr.mxu0 0.0
        %1132 = vmatpush1.msra.mxu0 0.0
        %1133 = vmatprep.subr.mxu0 0.0
        %1134 = vmatpush1.msra.mxu0 0.0
        %1135 = vmatprep.subr.mxu0 0.0
        %1136 = vmatpush1.msra.mxu0 0.0
        %1137 = vmatprep.subr.mxu0 0.0
        %1138 = vmatpush1.msra.mxu0 0.0
        %1139 = vmatprep.subr.mxu0 0.0
        %1140 = vmatpush1.msra.mxu0 0.0
        %1141 = vmatprep.subr.mxu0 0.0
        %1142 = vmatpush1.msra.mxu0 0.0
        %1143 = vmatprep.subr.mxu0 0.0
        %1144 = vmatpush1.msra.mxu0 0.0
        %1145 = vmatprep.subr.mxu0 0.0
        %1146 = vmatpush1.msra.mxu0 0.0
        %1147 = vmatprep.subr.mxu0 0.0
        %1148 = vmatpush1.msra.mxu0 0.0
        %1149 = vmatprep.subr.mxu0 0.0
        %1150 = vmatpush1.msra.mxu0 0.0
        %1151 = vmatprep.subr.mxu0 0.0
        %1152 = vmatpush1.msra.mxu0 0.0
        %1153 = vmatprep.subr.mxu0 0.0
        %1154 = vmatpush1.msra.mxu0 0.0
        %1155 = vmatprep.subr.mxu0 0.0
        %1156 = vmatpush1.msra.mxu0 0.0
        %1157 = vmatprep.subr.mxu0 0.0
        %1158 = vmatpush1.msra.mxu0 0.0
        %1159 = vmatprep.subr.mxu0 0.0
        %1160 = vmatpush1.msra.mxu0 0.0
        %1161 = vmatprep.subr.mxu0 0.0
        %1162 = vmatpush1.msra.mxu0 0.0
        %1163 = vmatprep.mubr.f32.mxu0 0.0
        %1164 = vmatmul.mubr.f32.gmra.mrb[0].mxu0 %v1097
        %v1165 = vpop.f32.mrb[0].mxu0
        %v1166 = vadd.f32 0.0, %v1165
        %v1167 = vpop.f32.mrb[0].mxu0
        %1168 = vdwg.mxu0
        %v1169 = vmul.f32 %v1166, 0.125
        %v1171 = vcombine.high %v1169, %v1169
        %v1173 = vunpack.c.l.s4 1966171168
        %v1174 = vunpack.c.0.s8 %v1173
        %v1175 = vlaneseq
        %v1176 = vshrl.u32 %v1175, 7
        %v1177 = vsub.s32 %v1174, %v1176
        %v1178 = vrot.slane %v1169, %v1177
        %v1180 = vunpack.c.l.s4 1966171168
        %v1181 = vunpack.c.0.s8 %v1180
        %v1182 = vlaneseq
        %v1183 = vshrl.u32 %v1182, 7
        %v1184 = vsub.s32 %v1181, %v1183
        %v1185 = vrot.slane %v1171, %v1184
        %v1186 = vcombine.high %v1178, %v1178
        %v1187 = vcombine.high %v1185, %v1185
        %v1189 = vunpack.c.l.s4 1966171168
        %v1190 = vunpack.c.0.s8 %v1189
        %v1191 = vlaneseq
        %v1192 = vshrl.u32 %v1191, 7
        %v1193 = vsub.s32 %v1190, %v1192
        %v1194 = vrot.slane %v1178, %v1193
        %v1196 = vunpack.c.l.s4 1966171168
        %v1197 = vunpack.c.0.s8 %v1196
        %v1198 = vlaneseq
        %v1199 = vshrl.u32 %v1198, 7
        %v1200 = vsub.s32 %v1197, %v1199
        %v1201 = vrot.slane %v1185, %v1200
        %v1203 = vunpack.c.l.s4 1966171168
        %v1204 = vunpack.c.0.s8 %v1203
        %v1205 = vlaneseq
        %v1206 = vshrl.u32 %v1205, 7
        %v1207 = vsub.s32 %v1204, %v1206
        %v1208 = vrot.slane %v1186, %v1207
        %v1210 = vunpack.c.l.s4 1966171168
        %v1211 = vunpack.c.0.s8 %v1210
        %v1212 = vlaneseq
        %v1213 = vshrl.u32 %v1212, 7
        %v1214 = vsub.s32 %v1211, %v1213
        %v1215 = vrot.slane %v1187, %v1214
        %v1216 = vcombine.high %v1194, %v1194
        %v1217 = vcombine.high %v1201, %v1201
        %v1218 = vcombine.high %v1208, %v1208
        %v1219 = vcombine.high %v1215, %v1215
        %v1220 = vlaneseq
        %v1221 = vshrl.u32 %v1220, 7
        %v1222 = vsub.s32 0, %v1221
        %v1223 = vrot.slane %v1169, %v1222
        %1225 = vbcast.lane.b32.xlu0 %v1223, 256
        %v1226 = vpop.permute.xlu0 %1225
        %v1227 = vlaneseq
        %v1228 = vshrl.u32 %v1227, 7
        %v1229 = vsub.s32 1, %v1228
        %v1230 = vrot.slane %v1169, %v1229
        %1232 = vbcast.lane.b32.xlu0 %v1230, 256
        %v1233 = vpop.permute.xlu0 %1232
        %v1234 = vlaneseq
        %v1235 = vshrl.u32 %v1234, 7
        %v1236 = vsub.s32 2, %v1235
        %v1237 = vrot.slane %v1169, %v1236
        %1239 = vbcast.lane.b32.xlu0 %v1237, 256
        %v1240 = vpop.permute.xlu0 %1239
        %v1241 = vlaneseq
        %v1242 = vshrl.u32 %v1241, 7
        %v1243 = vsub.s32 3, %v1242
        %v1244 = vrot.slane %v1169, %v1243
        %1246 = vbcast.lane.b32.xlu0 %v1244, 256
        %v1247 = vpop.permute.xlu0 %1246
        %v1248 = vlaneseq
        %v1249 = vshrl.u32 %v1248, 7
        %v1250 = vsub.s32 4, %v1249
        %v1251 = vrot.slane %v1169, %v1250
        %1253 = vbcast.lane.b32.xlu0 %v1251, 256
        %v1254 = vpop.permute.xlu0 %1253
        %v1255 = vlaneseq
        %v1256 = vshrl.u32 %v1255, 7
        %v1257 = vsub.s32 5, %v1256
        %v1258 = vrot.slane %v1169, %v1257
        %1260 = vbcast.lane.b32.xlu0 %v1258, 256
        %v1261 = vpop.permute.xlu0 %1260
        %v1262 = vlaneseq
        %v1263 = vshrl.u32 %v1262, 7
        %v1264 = vsub.s32 6, %v1263
        %v1265 = vrot.slane %v1169, %v1264
        %1267 = vbcast.lane.b32.xlu0 %v1265, 256
        %v1268 = vpop.permute.xlu0 %1267
        %v1269 = vlaneseq
        %v1270 = vshrl.u32 %v1269, 7
        %v1271 = vsub.s32 7, %v1270
        %v1272 = vrot.slane %v1169, %v1271
        %1274 = vbcast.lane.b32.xlu0 %v1272, 256
        %v1275 = vpop.permute.xlu0 %1274
        %v1276 = vlaneseq
        %v1277 = vshrl.u32 %v1276, 7
        %v1278 = vsub.s32 0, %v1277
        %v1279 = vrot.slane %v1194, %v1278
        %v1280 = vlaneseq
        %v1281 = vshrl.u32 %v1280, 7
        %v1282 = vsub.s32 0, %v1281
        %v1283 = vrot.slane %v1208, %v1282
        %v1284 = vlaneseq
        %v1285 = vshrl.u32 %v1284, 7
        %v1286 = vsub.s32 0, %v1285
        %v1287 = vrot.slane %v1216, %v1286
        %v1288 = vlaneseq
        %v1289 = vshrl.u32 %v1288, 7
        %v1290 = vsub.s32 0, %v1289
        %v1291 = vrot.slane %v1218, %v1290
        %v1292 = vlaneseq
        %v1293 = vshrl.u32 %v1292, 7
        %v1294 = vsub.s32 0, %v1293
        %v1295 = vrot.slane %v1201, %v1294
        %v1296 = vlaneseq
        %v1297 = vshrl.u32 %v1296, 7
        %v1298 = vsub.s32 0, %v1297
        %v1299 = vrot.slane %v1215, %v1298
        %v1300 = vlaneseq
        %v1301 = vshrl.u32 %v1300, 7
        %v1302 = vsub.s32 0, %v1301
        %v1303 = vrot.slane %v1217, %v1302
        %v1304 = vlaneseq
        %v1305 = vshrl.u32 %v1304, 7
        %v1306 = vsub.s32 0, %v1305
        %v1307 = vrot.slane %v1219, %v1306
        %vm1316 = vcmp.ge.f32.partialorder %v1279, %v1226
        %vm1317 = vcmp.ge.f32.partialorder %v1283, %v1233
        %vm1318 = vcmp.ge.f32.partialorder %v1287, %v1240
        %vm1319 = vcmp.ge.f32.partialorder %v1291, %v1247
        %vm1320 = vcmp.ge.f32.partialorder %v1295, %v1254
        %vm1321 = vcmp.ge.f32.partialorder %v1299, %v1261
        %vm1322 = vcmp.ge.f32.partialorder %v1303, %v1268
        %vm1323 = vcmp.ge.f32.partialorder %v1307, %v1275
        %v1324 = vsel %vm1316, 1, 0
        %v1325 = vsel %vm1317, 1, 0
        %v1326 = vsel %vm1318, 1, 0
        %v1327 = vsel %vm1319, 1, 0
        %v1328 = vsel %vm1320, 1, 0
        %v1329 = vsel %vm1321, 1, 0
        %v1330 = vsel %vm1322, 1, 0
        %v1331 = vsel %vm1323, 1, 0
        %v1332 = vcvt.s32.f32 %v1324
        %v1333 = vcvt.s32.f32 %v1325
        %v1334 = vcvt.s32.f32 %v1326
        %v1335 = vcvt.s32.f32 %v1327
        %v1336 = vcvt.s32.f32 %v1328
        %v1337 = vcvt.s32.f32 %v1329
        %v1338 = vcvt.s32.f32 %v1330
        %v1339 = vcvt.s32.f32 %v1331
        %v1340 = vsel %vm754, %v1332, 0.0
        %1341 = vadd.xlane.f32.xlu0 %v1340
        %v1342 = vpop.xlane.xlu0 %1341
        %v1343 = vsel %vm754, %v1333, 0.0
        %1344 = vadd.xlane.f32.xlu0 %v1343
        %v1345 = vpop.xlane.xlu0 %1344
        %v1346 = vsel %vm754, %v1334, 0.0
        %1347 = vadd.xlane.f32.xlu0 %v1346
        %v1348 = vpop.xlane.xlu0 %1347
        %v1349 = vsel %vm754, %v1335, 0.0
        %1350 = vadd.xlane.f32.xlu0 %v1349
        %v1351 = vpop.xlane.xlu0 %1350
        %v1352 = vsel %vm754, %v1336, 0.0
        %1353 = vadd.xlane.f32.xlu0 %v1352
        %v1354 = vpop.xlane.xlu0 %1353
        %v1355 = vsel %vm754, %v1337, 0.0
        %1356 = vadd.xlane.f32.xlu0 %v1355
        %v1357 = vpop.xlane.xlu0 %1356
        %v1358 = vsel %vm754, %v1338, 0.0
        %1359 = vadd.xlane.f32.xlu0 %v1358
        %v1360 = vpop.xlane.xlu0 %1359
        %v1361 = vsel %vm754, %v1339, 0.0
        %1362 = vadd.xlane.f32.xlu0 %v1361
        %v1363 = vpop.xlane.xlu0 %1362
        %v1364 = vmul.f32 %v1332, %v1279
        %v1365 = vmul.f32 %v1333, %v1283
        %v1366 = vmul.f32 %v1334, %v1287
        %v1367 = vmul.f32 %v1335, %v1291
        %v1368 = vmul.f32 %v1336, %v1295
        %v1369 = vmul.f32 %v1337, %v1299
        %v1370 = vmul.f32 %v1338, %v1303
        %v1371 = vmul.f32 %v1339, %v1307
        %v1372 = vsel %vm754, %v1364, 0.0
        %1373 = vadd.xlane.f32.xlu0 %v1372
        %v1374 = vpop.xlane.xlu0 %1373
        %v1375 = vsel %vm754, %v1365, 0.0
        %1376 = vadd.xlane.f32.xlu0 %v1375
        %v1377 = vpop.xlane.xlu0 %1376
        %v1378 = vsel %vm754, %v1366, 0.0
        %1379 = vadd.xlane.f32.xlu0 %v1378
        %v1380 = vpop.xlane.xlu0 %1379
        %v1381 = vsel %vm754, %v1367, 0.0
        %1382 = vadd.xlane.f32.xlu0 %v1381
        %v1383 = vpop.xlane.xlu0 %1382
        %v1384 = vsel %vm754, %v1368, 0.0
        %1385 = vadd.xlane.f32.xlu0 %v1384
        %v1386 = vpop.xlane.xlu0 %1385
        %v1387 = vsel %vm754, %v1369, 0.0
        %1388 = vadd.xlane.f32.xlu0 %v1387
        %v1389 = vpop.xlane.xlu0 %1388
        %v1390 = vsel %vm754, %v1370, 0.0
        %1391 = vadd.xlane.f32.xlu0 %v1390
        %v1392 = vpop.xlane.xlu0 %1391
        %v1393 = vsel %vm754, %v1371, 0.0
        %1394 = vadd.xlane.f32.xlu0 %v1393
        %v1395 = vpop.xlane.xlu0 %1394
        %v1396 = vlaneseq
        %v1397 = vshrl.u32 %v1396, 7
        %v1398 = vsub.s32 0, %v1397
        %v1399 = vrot.slane %v1169, %v1398
        %1401 = vbcast.lane.b32.xlu0 %v1399, 256
        %v1402 = vpop.permute.xlu0 %1401
        %v1403 = vlaneseq
        %v1404 = vshrl.u32 %v1403, 7
        %v1405 = vsub.s32 1, %v1404
        %v1406 = vrot.slane %v1169, %v1405
        %1408 = vbcast.lane.b32.xlu0 %v1406, 256
        %v1409 = vpop.permute.xlu0 %1408
        %v1410 = vlaneseq
        %v1411 = vshrl.u32 %v1410, 7
        %v1412 = vsub.s32 2, %v1411
        %v1413 = vrot.slane %v1169, %v1412
        %1415 = vbcast.lane.b32.xlu0 %v1413, 256
        %v1416 = vpop.permute.xlu0 %1415
        %v1417 = vlaneseq
        %v1418 = vshrl.u32 %v1417, 7
        %v1419 = vsub.s32 3, %v1418
        %v1420 = vrot.slane %v1169, %v1419
        %1422 = vbcast.lane.b32.xlu0 %v1420, 256
        %v1423 = vpop.permute.xlu0 %1422
        %v1424 = vlaneseq
        %v1425 = vshrl.u32 %v1424, 7
        %v1426 = vsub.s32 4, %v1425
        %v1427 = vrot.slane %v1169, %v1426
        %1429 = vbcast.lane.b32.xlu0 %v1427, 256
        %v1430 = vpop.permute.xlu0 %1429
        %v1431 = vlaneseq
        %v1432 = vshrl.u32 %v1431, 7
        %v1433 = vsub.s32 5, %v1432
        %v1434 = vrot.slane %v1169, %v1433
        %1436 = vbcast.lane.b32.xlu0 %v1434, 256
        %v1437 = vpop.permute.xlu0 %1436
        %v1438 = vlaneseq
        %v1439 = vshrl.u32 %v1438, 7
        %v1440 = vsub.s32 6, %v1439
        %v1441 = vrot.slane %v1169, %v1440
        %1443 = vbcast.lane.b32.xlu0 %v1441, 256
        %v1444 = vpop.permute.xlu0 %1443
        %v1445 = vlaneseq
        %v1446 = vshrl.u32 %v1445, 7
        %v1447 = vsub.s32 7, %v1446
        %v1448 = vrot.slane %v1169, %v1447
        %1450 = vbcast.lane.b32.xlu0 %v1448, 256
        %v1451 = vpop.permute.xlu0 %1450
        %v1460 = vmul.f32 %v1342, %v1402
        %v1461 = vmul.f32 %v1345, %v1409
        %v1462 = vmul.f32 %v1348, %v1416
        %v1463 = vmul.f32 %v1351, %v1423
        %v1464 = vmul.f32 %v1354, %v1430
        %v1465 = vmul.f32 %v1357, %v1437
        %v1466 = vmul.f32 %v1360, %v1444
        %v1467 = vmul.f32 %v1363, %v1451
        %v1468 = vadd.f32 %v1460, 1.0
        %v1469 = vadd.f32 %v1461, 1.0
        %v1470 = vadd.f32 %v1462, 1.0
        %v1471 = vadd.f32 %v1463, 1.0
        %v1472 = vadd.f32 %v1464, 1.0
        %v1473 = vadd.f32 %v1465, 1.0
        %v1474 = vadd.f32 %v1466, 1.0
        %v1475 = vadd.f32 %v1467, 1.0
        %vm1476 = vcmp.gt.f32.partialorder %v1468, %v1374
        %vm1477 = vcmp.gt.f32.partialorder %v1469, %v1377
        %vm1478 = vcmp.gt.f32.partialorder %v1470, %v1380
        %vm1479 = vcmp.gt.f32.partialorder %v1471, %v1383
        %vm1480 = vcmp.gt.f32.partialorder %v1472, %v1386
        %vm1481 = vcmp.gt.f32.partialorder %v1473, %v1389
        %vm1482 = vcmp.gt.f32.partialorder %v1474, %v1392
        %vm1483 = vcmp.gt.f32.partialorder %v1475, %v1395
        %v1484 = vsel %vm1476, 1, 0
        %v1485 = vsel %vm1477, 1, 0
        %v1486 = vsel %vm1478, 1, 0
        %v1487 = vsel %vm1479, 1, 0
        %v1488 = vsel %vm1480, 1, 0
        %v1489 = vsel %vm1481, 1, 0
        %v1490 = vsel %vm1482, 1, 0
        %v1491 = vsel %vm1483, 1, 0
        %v1492 = vcvt.s32.f32 %v1484
        %v1493 = vcvt.s32.f32 %v1485
        %v1494 = vcvt.s32.f32 %v1486
        %v1495 = vcvt.s32.f32 %v1487
        %v1496 = vcvt.s32.f32 %v1488
        %v1497 = vcvt.s32.f32 %v1489
        %v1498 = vcvt.s32.f32 %v1490
        %v1499 = vcvt.s32.f32 %v1491
        %1508 = vset.pattern.permute.xlu0 0
        %1509 = vperm.xlu0 %1508, %v1492
        %v1510 = vpop.permute.xlu0 %1509
        %1511 = vset.pattern.permute.xlu0 0
        %1512 = vperm.xlu0 %1511, %v1493
        %v1513 = vpop.permute.xlu0 %1512
        %1514 = vset.pattern.permute.xlu0 0
        %1515 = vperm.xlu0 %1514, %v1494
        %v1516 = vpop.permute.xlu0 %1515
        %1517 = vset.pattern.permute.xlu0 0
        %1518 = vperm.xlu0 %1517, %v1495
        %v1519 = vpop.permute.xlu0 %1518
        %1520 = vset.pattern.permute.xlu0 0
        %1521 = vperm.xlu0 %1520, %v1496
        %v1522 = vpop.permute.xlu0 %1521
        %1523 = vset.pattern.permute.xlu0 0
        %1524 = vperm.xlu0 %1523, %v1497
        %v1525 = vpop.permute.xlu0 %1524
        %1526 = vset.pattern.permute.xlu0 0
        %1527 = vperm.xlu0 %1526, %v1498
        %v1528 = vpop.permute.xlu0 %1527
        %1529 = vset.pattern.permute.xlu0 0
        %1530 = vperm.xlu0 %1529, %v1499
        %v1531 = vpop.permute.xlu0 %1530
        %v1532 = vlaneseq
        %v1533 = vshrl.u32 %v1532, 7
        %v1534 = vsub.s32 %v948, %v1533
        %v1535 = vrot.slane %v1510, %v1534
        %v1536 = vlaneseq
        %v1537 = vshrl.u32 %v1536, 7
        %v1538 = vsub.s32 %v948, %v1537
        %v1539 = vrot.slane %v1513, %v1538
        %v1540 = vlaneseq
        %v1541 = vshrl.u32 %v1540, 7
        %v1542 = vsub.s32 %v948, %v1541
        %v1543 = vrot.slane %v1516, %v1542
        %v1544 = vlaneseq
        %v1545 = vshrl.u32 %v1544, 7
        %v1546 = vsub.s32 %v948, %v1545
        %v1547 = vrot.slane %v1519, %v1546
        %v1548 = vlaneseq
        %v1549 = vshrl.u32 %v1548, 7
        %v1550 = vsub.s32 %v948, %v1549
        %v1551 = vrot.slane %v1522, %v1550
        %v1552 = vlaneseq
        %v1553 = vshrl.u32 %v1552, 7
        %v1554 = vsub.s32 %v948, %v1553
        %v1555 = vrot.slane %v1525, %v1554
        %v1556 = vlaneseq
        %v1557 = vshrl.u32 %v1556, 7
        %v1558 = vsub.s32 %v948, %v1557
        %v1559 = vrot.slane %v1528, %v1558
        %v1560 = vlaneseq
        %v1561 = vshrl.u32 %v1560, 7
        %v1562 = vsub.s32 %v948, %v1561
        %v1563 = vrot.slane %v1531, %v1562
        %v1564 = vsel %vm981, %v1539, %v1535
        %v1565 = vsel %vm983, %v1543, %v1564
        %v1566 = vsel %vm985, %v1547, %v1565
        %v1567 = vsel %vm987, %v1551, %v1566
        %v1568 = vsel %vm989, %v1555, %v1567
        %v1569 = vsel %vm991, %v1559, %v1568
        %v1570 = vsel %vm993, %v1563, %v1569
        %v1572 = vsel %vm754, %v1570, 0.0
        %1573 = vadd.xlane.f32.xlu0 %v1572
        %v1574 = vpop.xlane.xlu0 %1573
        %v1575 = vmul.f32 %v1492, %v1402
        %v1576 = vmul.f32 %v1493, %v1409
        %v1577 = vmul.f32 %v1494, %v1416
        %v1578 = vmul.f32 %v1495, %v1423
        %v1579 = vmul.f32 %v1496, %v1430
        %v1580 = vmul.f32 %v1497, %v1437
        %v1581 = vmul.f32 %v1498, %v1444
        %v1582 = vmul.f32 %v1499, %v1451
        %1591 = vset.pattern.permute.xlu0 0
        %1592 = vperm.xlu0 %1591, %v1575
        %v1593 = vpop.permute.xlu0 %1592
        %1594 = vset.pattern.permute.xlu0 0
        %1595 = vperm.xlu0 %1594, %v1576
        %v1596 = vpop.permute.xlu0 %1595
        %1597 = vset.pattern.permute.xlu0 0
        %1598 = vperm.xlu0 %1597, %v1577
        %v1599 = vpop.permute.xlu0 %1598
        %1600 = vset.pattern.permute.xlu0 0
        %1601 = vperm.xlu0 %1600, %v1578
        %v1602 = vpop.permute.xlu0 %1601
        %1603 = vset.pattern.permute.xlu0 0
        %1604 = vperm.xlu0 %1603, %v1579
        %v1605 = vpop.permute.xlu0 %1604
        %1606 = vset.pattern.permute.xlu0 0
        %1607 = vperm.xlu0 %1606, %v1580
        %v1608 = vpop.permute.xlu0 %1607
        %1609 = vset.pattern.permute.xlu0 0
        %1610 = vperm.xlu0 %1609, %v1581
        %v1611 = vpop.permute.xlu0 %1610
        %1612 = vset.pattern.permute.xlu0 0
        %1613 = vperm.xlu0 %1612, %v1582
        %v1614 = vpop.permute.xlu0 %1613
        %v1615 = vlaneseq
        %v1616 = vshrl.u32 %v1615, 7
        %v1617 = vsub.s32 %v948, %v1616
        %v1618 = vrot.slane %v1593, %v1617
        %v1619 = vlaneseq
        %v1620 = vshrl.u32 %v1619, 7
        %v1621 = vsub.s32 %v948, %v1620
        %v1622 = vrot.slane %v1596, %v1621
        %v1623 = vlaneseq
        %v1624 = vshrl.u32 %v1623, 7
        %v1625 = vsub.s32 %v948, %v1624
        %v1626 = vrot.slane %v1599, %v1625
        %v1627 = vlaneseq
        %v1628 = vshrl.u32 %v1627, 7
        %v1629 = vsub.s32 %v948, %v1628
        %v1630 = vrot.slane %v1602, %v1629
        %v1631 = vlaneseq
        %v1632 = vshrl.u32 %v1631, 7
        %v1633 = vsub.s32 %v948, %v1632
        %v1634 = vrot.slane %v1605, %v1633
        %v1635 = vlaneseq
        %v1636 = vshrl.u32 %v1635, 7
        %v1637 = vsub.s32 %v948, %v1636
        %v1638 = vrot.slane %v1608, %v1637
        %v1639 = vlaneseq
        %v1640 = vshrl.u32 %v1639, 7
        %v1641 = vsub.s32 %v948, %v1640
        %v1642 = vrot.slane %v1611, %v1641
        %v1643 = vlaneseq
        %v1644 = vshrl.u32 %v1643, 7
        %v1645 = vsub.s32 %v948, %v1644
        %v1646 = vrot.slane %v1614, %v1645
        %v1647 = vsel %vm981, %v1622, %v1618
        %v1648 = vsel %vm983, %v1626, %v1647
        %v1649 = vsel %vm985, %v1630, %v1648
        %v1650 = vsel %vm987, %v1634, %v1649
        %v1651 = vsel %vm989, %v1638, %v1650
        %v1652 = vsel %vm991, %v1642, %v1651
        %v1653 = vsel %vm993, %v1646, %v1652
        %v1655 = vsel %vm754, %v1653, 0.0
        %1656 = vadd.xlane.f32.xlu0 %v1655
        %v1657 = vpop.xlane.xlu0 %1656
        %v1658 = vsub.f32 %v1657, 1.0
        %v1659 = vrcp.pop %v1574
        %v1660 = vmul.f32 %v1658, %v1659
        %v1661 = vsub.f32 %v1169, %v1660
        %v1662 = vmax.f32 %v1661, 0.0
        %s1663 = scalar_lea.vmem %s257, 8 [#allocation7]
        %1664 = vst.msk [vmem:[%s1663] sm:$0xff] %vm754, %v1662
        %1666 = vrot.lane.b32.xlu0 %v1093, 32
        %v1667 = vpop.permute.xlu0 %1666
        %v1670 = vsel %vm754, %v1662, 0
        %1672 = vmatprep.subr.mxu0 0.0
        %1673 = vmatpush1.msra.mxu0 %v1667
        %1674 = vmatprep.subr.mxu0 0.0
        %1675 = vmatpush1.msra.mxu0 0.0
        %1676 = vmatprep.subr.mxu0 0.0
        %1677 = vmatpush1.msra.mxu0 0.0
        %1678 = vmatprep.subr.mxu0 0.0
        %1679 = vmatpush1.msra.mxu0 0.0
        %1680 = vmatprep.subr.mxu0 0.0
        %1681 = vmatpush1.msra.mxu0 0.0
        %1682 = vmatprep.subr.mxu0 0.0
        %1683 = vmatpush1.msra.mxu0 0.0
        %1684 = vmatprep.subr.mxu0 0.0
        %1685 = vmatpush1.msra.mxu0 0.0
        %1686 = vmatprep.subr.mxu0 0.0
        %1687 = vmatpush1.msra.mxu0 0.0
        %1688 = vmatprep.subr.mxu0 0.0
        %1689 = vmatpush1.msra.mxu0 0.0
        %1690 = vmatprep.subr.mxu0 0.0
        %1691 = vmatpush1.msra.mxu0 0.0
        %1692 = vmatprep.subr.mxu0 0.0
        %1693 = vmatpush1.msra.mxu0 0.0
        %1694 = vmatprep.subr.mxu0 0.0
        %1695 = vmatpush1.msra.mxu0 0.0
        %1696 = vmatprep.subr.mxu0 0.0
        %1697 = vmatpush1.msra.mxu0 0.0
        %1698 = vmatprep.subr.mxu0 0.0
        %1699 = vmatpush1.msra.mxu0 0.0
        %1700 = vmatprep.subr.mxu0 0.0
        %1701 = vmatpush1.msra.mxu0 0.0
        %1702 = vmatprep.subr.mxu0 0.0
        %1703 = vmatpush1.msra.mxu0 0.0
        %1704 = vmatprep.subr.mxu0 0.0
        %1705 = vmatpush1.msra.mxu0 0.0
        %1706 = vmatprep.subr.mxu0 0.0
        %1707 = vmatpush1.msra.mxu0 0.0
        %1708 = vmatprep.subr.mxu0 0.0
        %1709 = vmatpush1.msra.mxu0 0.0
        %1710 = vmatprep.subr.mxu0 0.0
        %1711 = vmatpush1.msra.mxu0 0.0
        %1712 = vmatprep.subr.mxu0 0.0
        %1713 = vmatpush1.msra.mxu0 0.0
        %1714 = vmatprep.subr.mxu0 0.0
        %1715 = vmatpush1.msra.mxu0 0.0
        %1716 = vmatprep.subr.mxu0 0.0
        %1717 = vmatpush1.msra.mxu0 0.0
        %1718 = vmatprep.subr.mxu0 0.0
        %1719 = vmatpush1.msra.mxu0 0.0
        %1720 = vmatprep.subr.mxu0 0.0
        %1721 = vmatpush1.msra.mxu0 0.0
        %1722 = vmatprep.subr.mxu0 0.0
        %1723 = vmatpush1.msra.mxu0 0.0
        %1724 = vmatprep.subr.mxu0 0.0
        %1725 = vmatpush1.msra.mxu0 0.0
        %1726 = vmatprep.subr.mxu0 0.0
        %1727 = vmatpush1.msra.mxu0 0.0
        %1728 = vmatprep.subr.mxu0 0.0
        %1729 = vmatpush1.msra.mxu0 0.0
        %1730 = vmatprep.subr.mxu0 0.0
        %1731 = vmatpush1.msra.mxu0 0.0
        %1732 = vmatprep.subr.mxu0 0.0
        %1733 = vmatpush1.msra.mxu0 0.0
        %1734 = vmatprep.subr.mxu0 0.0
        %1735 = vmatpush1.msra.mxu0 0.0
        %1736 = vmatprep.mubr.f32.mxu0 0.0
        %1737 = vmatmul.mubr.f32.gmra.mrb[0].mxu0 %v1670
        %v1738 = vpop.f32.mrb[0].mxu0
        %v1739 = vadd.f32 0.0, %v1738
        %v1740 = vpop.f32.mrb[0].mxu0
        %1741 = vdwg.mxu0
        %1743 = vrot.lane.b32.xlu0 %v508, 64
        %v1744 = vpop.permute.xlu0 %1743
        %v1747 = vsel %vm754, %v1086, 0
        %1749 = vmatprep.subr.mxu0 0.0
        %1750 = vmatpush1.msra.mxu0 %v1744
        %1751 = vmatprep.subr.mxu0 0.0
        %1752 = vmatpush1.msra.mxu0 0.0
        %1753 = vmatprep.subr.mxu0 0.0
        %1754 = vmatpush1.msra.mxu0 0.0
        %1755 = vmatprep.subr.mxu0 0.0
        %1756 = vmatpush1.msra.mxu0 0.0
        %1757 = vmatprep.subr.mxu0 0.0
        %1758 = vmatpush1.msra.mxu0 0.0
        %1759 = vmatprep.subr.mxu0 0.0
        %1760 = vmatpush1.msra.mxu0 0.0
        %1761 = vmatprep.subr.mxu0 0.0
        %1762 = vmatpush1.msra.mxu0 0.0
        %1763 = vmatprep.subr.mxu0 0.0
        %1764 = vmatpush1.msra.mxu0 0.0
        %1765 = vmatprep.subr.mxu0 0.0
        %1766 = vmatpush1.msra.mxu0 0.0
        %1767 = vmatprep.subr.mxu0 0.0
        %1768 = vmatpush1.msra.mxu0 0.0
        %1769 = vmatprep.subr.mxu0 0.0
        %1770 = vmatpush1.msra.mxu0 0.0
        %1771 = vmatprep.subr.mxu0 0.0
        %1772 = vmatpush1.msra.mxu0 0.0
        %1773 = vmatprep.subr.mxu0 0.0
        %1774 = vmatpush1.msra.mxu0 0.0
        %1775 = vmatprep.subr.mxu0 0.0
        %1776 = vmatpush1.msra.mxu0 0.0
        %1777 = vmatprep.subr.mxu0 0.0
        %1778 = vmatpush1.msra.mxu0 0.0
        %1779 = vmatprep.subr.mxu0 0.0
        %1780 = vmatpush1.msra.mxu0 0.0
        %1781 = vmatprep.subr.mxu0 0.0
        %1782 = vmatpush1.msra.mxu0 0.0
        %1783 = vmatprep.subr.mxu0 0.0
        %1784 = vmatpush1.msra.mxu0 0.0
        %1785 = vmatprep.subr.mxu0 0.0
        %1786 = vmatpush1.msra.mxu0 0.0
        %1787 = vmatprep.subr.mxu0 0.0
        %1788 = vmatpush1.msra.mxu0 0.0
        %1789 = vmatprep.subr.mxu0 0.0
        %1790 = vmatpush1.msra.mxu0 0.0
        %1791 = vmatprep.subr.mxu0 0.0
        %1792 = vmatpush1.msra.mxu0 0.0
        %1793 = vmatprep.subr.mxu0 0.0
        %1794 = vmatpush1.msra.mxu0 0.0
        %1795 = vmatprep.subr.mxu0 0.0
        %1796 = vmatpush1.msra.mxu0 0.0
        %1797 = vmatprep.subr.mxu0 0.0
        %1798 = vmatpush1.msra.mxu0 0.0
        %1799 = vmatprep.subr.mxu0 0.0
        %1800 = vmatpush1.msra.mxu0 0.0
        %1801 = vmatprep.subr.mxu0 0.0
        %1802 = vmatpush1.msra.mxu0 0.0
        %1803 = vmatprep.subr.mxu0 0.0
        %1804 = vmatpush1.msra.mxu0 0.0
        %1805 = vmatprep.subr.mxu0 0.0
        %1806 = vmatpush1.msra.mxu0 0.0
        %1807 = vmatprep.subr.mxu0 0.0
        %1808 = vmatpush1.msra.mxu0 0.0
        %1809 = vmatprep.subr.mxu0 0.0
        %1810 = vmatpush1.msra.mxu0 0.0
        %1811 = vmatprep.subr.mxu0 0.0
        %1812 = vmatpush1.msra.mxu0 0.0
        %1813 = vmatprep.mubr.f32.mxu0 0.0
        %1814 = vmatmul.mubr.f32.gmra.mrb[0].mxu0 %v1747
        %v1815 = vpop.f32.mrb[0].mxu0
        %v1816 = vadd.f32 %v1739, %v1815
        %v1817 = vpop.f32.mrb[0].mxu0
        %1818 = vdwg.mxu0
        %v1819 = vmul.f32 %v1816, 0.5
        %1820 = vst.msk [vmem:[%s250] sm:$0xff] %vm509, %v1819
        %s1821 = sand.u32 %s139, 1
        %s1822 = scalar_lea.sflag [#allocation6], %s1821
        %s1823 = sand.u32 %s139, 1
        %s1824 = smul.addr %s1823, 8
        %s1825 = scalar_lea.vmem [#allocation5], %s1824
        %s1826 = sand.u32 %s167, 1
        %s1827 = scalar_lea.sflag [#allocation8], %s1826
        %s1828 = sand.u32 %s167, 1
        %s1829 = smul.addr %s1828, 16
        %s1830 = scalar_lea.vmem [#allocation7], %s1829
        // Predicated region
        $region41: #{tpu_custom_call.1} parent=35 // pred_check
          %p1831 = pneg %p149
        $region42: #{tpu_custom_call.1} parent=35 // pred_check_branch
          %1833 = sbr.rel (%p1831) target = $region44
        $region43: #{tpu_custom_call.1} parent=35 // pred_region
          %s1835 = ssub.s32 128, 128
          %1836 = vsyncadd %s1822, %s1835
          %s1837 = sadd.s32 %s28, %s27
          %s1838 = smul.addr %s1837, 128
          %s1839 = scalar_lea.hbm %s4, %s1838
          %s1841 = sshll.u32 %s1825, 4
          %s1842 = int_to_ptr.vmem [resolvable:$true] %s1841
          %1844 = dma.vmem_to_hbm [thread:$0]  %s1842, 128, %s1839, %s1822
        $region44: #{tpu_custom_call.1} parent=35 // pred_fallthru
          _
        // Predicated region
        $region45: #{tpu_custom_call.1} parent=35 // pred_check
          %p1845 = pneg %p177
        $region46: #{tpu_custom_call.1} parent=35 // pred_check_branch
          %1847 = sbr.rel (%p1845) target = $region48
        $region47: #{tpu_custom_call.1} parent=35 // pred_region
          %s1849 = ssub.s32 256, 256
          %1850 = vsyncadd %s1827, %s1849
          %s1851 = smul.addr %s27, 2
          %s1852 = sadd.s32 %s28, %s1851
          %s1853 = smul.addr %s1852, 128
          %s1854 = scalar_lea.hbm %s5, %s1853
          %s1855 = sshll.u32 %s1830, 4
          %s1856 = int_to_ptr.vmem [resolvable:$true] %s1855
          %1861 = dma.vmem_to_hbm [thread:$0]  %s1856, 256, %s1854, %s1827, 128, 128, 8
        $region48: #{tpu_custom_call.1} parent=35 // pred_fallthru
          _
      $region36: #{tpu_custom_call.1} parent=5 // pred_fallthru
        _
      %p1862 = scmp.le.s32.totalorder 2, %s18
      // Predicated region
      $region49: #{tpu_custom_call.1} parent=5 // pred_check
        %p1863 = pneg %p1862
      $region50: #{tpu_custom_call.1} parent=5 // pred_check_branch
        %1865 = sbr.rel (%p1863) target = $region52
      $region51: #{tpu_custom_call.1} parent=5 // pred_region
        %s1866 = ssub.s32 %s18, 2
        // Predicated region
        $region53: #{tpu_custom_call.1} parent=51 // pred_check
          %p1867 = pneg %p155
        $region54: #{tpu_custom_call.1} parent=51 // pred_check_branch
          %1869 = sbr.rel (%p1867) target = $region56
        $region55: #{tpu_custom_call.1} parent=51 // pred_region
          %s1870 = sand.u32 %s140, 1
          %s1871 = scalar_lea.sflag [#allocation6], %s1870
          %s1872 = sand.u32 %s140, 1
          %s1873 = smul.addr %s1872, 8
          %s1874 = scalar_lea.vmem [#allocation5], %s1873
          %1875 = dma.done %s1871, 128
        $region56: #{tpu_custom_call.1} parent=51 // pred_fallthru
          _
        // Predicated region
        $region57: #{tpu_custom_call.1} parent=51 // pred_check
          %p1876 = pneg %p183
        $region58: #{tpu_custom_call.1} parent=51 // pred_check_branch
          %1878 = sbr.rel (%p1876) target = $region60
        $region59: #{tpu_custom_call.1} parent=51 // pred_region
          %s1879 = sand.u32 %s168, 1
          %s1880 = scalar_lea.sflag [#allocation8], %s1879
          %s1881 = sand.u32 %s168, 1
          %s1882 = smul.addr %s1881, 16
          %s1883 = scalar_lea.vmem [#allocation7], %s1882
          %1884 = dma.done %s1880, 256
        $region60: #{tpu_custom_call.1} parent=51 // pred_fallthru
          _
      $region52: #{tpu_custom_call.1} parent=5 // pred_fallthru
        _
    $region6: #{tpu_custom_call.1} parent=1 // loop_footer
      %s22 = sadd.s32 1, %s18
    $region7: #{tpu_custom_call.1} parent=1 // loop_footer_branch
      %17 = sbr.rel target = $region3
    $region8: #{tpu_custom_call.1} parent=1 // loop_exit
      _
    %1885 = vsyncpa [#allocation6], 1
    %s1886 = scalar_lea.sflag [#allocation6], 1
    %1887 = vsyncpa %s1886, 1
    %1888 = vsyncpa [#allocation8], 1
    %s1889 = scalar_lea.sflag [#allocation8], 1
    %1890 = vsyncpa %s1889, 1

</llo_original>
